<compile_context>
chip_gen: v5e
topology: v5e:2x2
jax: 0.10.0
libtpu: 0.0.40
codegen_flags: <defaults>
</compile_context>

<pallas_src>
import jax
import jax.numpy as jnp
from jax import lax
from jax.experimental import pallas as pl
from jax.experimental.pallas import tpu as pltpu

HIDDEN = 768


def pooler_kernel(x_ref, w_ref, b_ref, o_ref):
    # x_ref: (TM, H) f32 first-token tile
    # w_ref: (H_out, H_in) bf16, torch layout (no wrapper transpose)
    # b_ref: (1, H_out) f32
    x = x_ref[...].astype(jnp.bfloat16)
    # x @ W.T : contract x dim 1 against w dim 1 (MXU handles transposed RHS natively)
    y = lax.dot_general(
        x, w_ref[...],
        dimension_numbers=(((1,), (1,)), ((), ())),
        preferred_element_type=jnp.float32,
    )
    y = y + b_ref[...]                      # broadcast bias (1, H)
    o_ref[...] = jnp.tanh(y).astype(o_ref.dtype)   # EUP tanh


def _pick_tm(batch: int) -> int:
    # Biggest MXU-friendly batch tile that divides B; fall back to B (full dim)
    # so the (8,128) block constraint is always satisfied.
    for t in (256, 128, 64, 32, 16, 8):
        if batch % t == 0:
            return t
    return batch


def bert_pooler_i2t(hidden_states, weight, bias):
    """hidden_states: (B, S, H) f32; weight: (H_out, H_in) torch-style; bias: (H_out,)."""
    B, S, H = hidden_states.shape
    assert H == HIDDEN

    # Only token 0 is used: slice in the wrapper so the kernel never touches
    # the other S-1 tokens (S x less DMA, fits VMEM on all chip generations).
    x = hidden_states[:, 0, :]                      # (B, H)
    w_bf16 = weight.astype(jnp.bfloat16)            # bf16 weight: half DMA, MXU-native
    b2 = bias.reshape(1, H).astype(jnp.float32)     # keep 2D for lane layout

    tm = _pick_tm(B)
    grid = (B // tm,)

    cost = pl.CostEstimate(
        flops=2 * B * H * H,
        transcendentals=B * H,
        bytes_accessed=B * H * 4 * 2 + H * H * 2 + H * 4,
    )

    return pl.pallas_call(
        pooler_kernel,
        out_shape=jax.ShapeDtypeStruct((B, H), hidden_states.dtype),
        grid_spec=pl.GridSpec(
            grid=grid,
            in_specs=[
                pl.BlockSpec((tm, H), lambda i: (i, 0)),   # first-token batch tile
                pl.BlockSpec((H, H), lambda i: (0, 0)),    # weight resident across tiles
                pl.BlockSpec((1, H), lambda i: (0, 0)),    # bias resident across tiles
            ],
            out_specs=pl.BlockSpec((tm, H), lambda i: (i, 0)),
        ),
        compiler_params=pltpu.CompilerParams(
            dimension_semantics=("parallel",)),
        cost_estimate=cost,
    )(x, w_bf16, b2)


if __name__ == "__main__":
    key = jax.random.PRNGKey(0)
    k_h, k_w, k_b = jax.random.split(key, 3)

    B, S, H = 2, 8, HIDDEN
    hidden_states = jax.random.normal(k_h, (B, S, H), dtype=jnp.float32)

    # Deterministic parameter init (matches nn.Linear(768, 768) shapes).
    bound = 1.0 / (H ** 0.5)
    weight = jax.random.uniform(k_w, (H, H), minval=-bound, maxval=bound,
                                dtype=jnp.float32)       # (out, in)
    bias = jax.random.uniform(k_b, (H,), minval=-bound, maxval=bound,
                              dtype=jnp.float32)

    out = bert_pooler_i2t(hidden_states, weight, bias)
    out = jax.block_until_ready(out)

    # Reference check in plain JAX (f32). bf16 matmul inputs -> looser tolerance;
    # tanh saturation keeps the error small.
    ref = jnp.tanh(hidden_states[:, 0] @ weight.T + bias)
    assert out.shape == (B, H)
    assert jnp.allclose(out, ref, atol=2e-2, rtol=2e-2), float(jnp.max(jnp.abs(out - ref)))

    print("KERNEL_OK")
</pallas_src>

<mosaic_0001>
module attributes {stable_mosaic.version = 11 : i64} {
  func.func @pooler_kernel(%arg0: i32, %arg1: memref<2x768xf32, #tpu.memory_space<vmem>>, %arg2: memref<768x768xbf16, #tpu.memory_space<vmem>>, %arg3: memref<1x768xf32, #tpu.memory_space<vmem>>, %arg4: memref<2x768xf32, #tpu.memory_space<vmem>>) attributes {dimension_semantics = [#tpu.dimension_semantics<parallel>], iteration_bounds = array<i64: 1>, scalar_prefetch = 0 : i64, scratch_operands = 0 : i64, tpu.core_type = #tpu.core_type<tc>, window_params = [{transform_indices = @transform_0, window_bounds = array<i64: 2, 768>}, {pipeline_mode = #tpu.pipeline_mode<synchronous>, transform_indices = @transform_1, window_bounds = array<i64: 768, 768>}, {pipeline_mode = #tpu.pipeline_mode<synchronous>, transform_indices = @transform_2, window_bounds = array<i64: 1, 768>}, {transform_indices = @transform_3, window_bounds = array<i64: 2, 768>}]} {
    %c0 = arith.constant 0 : index
    %c0_0 = arith.constant 0 : index
    %0 = vector.load %arg1[%c0, %c0_0] : memref<2x768xf32, #tpu.memory_space<vmem>>, vector<2x768xf32>
    %1 = arith.truncf %0 : vector<2x768xf32> to vector<2x768xbf16>
    %c0_1 = arith.constant 0 : index
    %c0_2 = arith.constant 0 : index
    %2 = vector.load %arg2[%c0_1, %c0_2] : memref<768x768xbf16, #tpu.memory_space<vmem>>, vector<768x768xbf16>
    %cst = arith.constant dense<0.000000e+00> : vector<2x768xf32>
    %3 = tpu.matmul %1, %2, %cst {dimension_numbers = #tpu.dot_dimension_numbers<[1], [1], [0], [0], [0, 0, 1, 0], [], []>} : vector<2x768xbf16>, vector<768x768xbf16>, vector<2x768xf32> -> vector<2x768xf32>
    %c0_3 = arith.constant 0 : index
    %c0_4 = arith.constant 0 : index
    %4 = vector.load %arg3[%c0_3, %c0_4] : memref<1x768xf32, #tpu.memory_space<vmem>>, vector<1x768xf32>
    %5 = vector.broadcast %4 : vector<1x768xf32> to vector<2x768xf32>
    %6 = arith.addf %3, %5 : vector<2x768xf32>
    %7 = math.tanh %6 : vector<2x768xf32>
    %c0_5 = arith.constant 0 : index
    %c0_6 = arith.constant 0 : index
    %8 = vector.load %arg4[%c0_5, %c0_6] : memref<2x768xf32, #tpu.memory_space<vmem>>, vector<2x768xf32>
    tpu.vector_store %arg4[%c0_5, %c0_6], %7 {strides = array<i32>} : memref<2x768xf32, #tpu.memory_space<vmem>>, vector<2x768xf32>,
    return
  }
  func.func @transform_0(%arg0: i32) -> (i32, i32) {
    %c0_i32 = arith.constant 0 : i32
    %c0_i32_0 = arith.constant 0 : i32
    return %arg0, %c0_i32 : i32, i32
  }
  func.func @transform_1(%arg0: i32) -> (i32, i32) {
    %c0_i32 = arith.constant 0 : i32
    %c0_i32_0 = arith.constant 0 : i32
    %c0_i32_1 = arith.constant 0 : i32
    return %c0_i32, %c0_i32_0 : i32, i32
  }
  func.func @transform_2(%arg0: i32) -> (i32, i32) {
    %c0_i32 = arith.constant 0 : i32
    %c0_i32_0 = arith.constant 0 : i32
    %c0_i32_1 = arith.constant 0 : i32
    return %c0_i32, %c0_i32_0 : i32, i32
  }
  func.func @transform_3(%arg0: i32) -> (i32, i32) {
    %c0_i32 = arith.constant 0 : i32
    %c0_i32_0 = arith.constant 0 : i32
    return %arg0, %c0_i32 : i32, i32
  }
}

</mosaic_0001>

<llo_original>
// kernel: tpu_custom_call.1
$region0: #{tpu_custom_call.1}
  #allocation0 [shape = 'u32[]', space=smem, size = 0x4, offset = 0x4, fixed_abs, tag = 'smem constant byte address 0x4 - core index']
  #allocation1 [shape = 'u32[72,128]{1,0:T(1,128)}', space=vmem, size = 0x9000, scoped, tag = 'internal scratch']
  %s0 = inlined_call_operand.hbm [shape: f32[2,768], index: 0, kind: input, shape index: {}]
  %s1 = inlined_call_operand.hbm [shape: bf16[768,768], index: 1, kind: input, shape index: {}]
  %s2 = inlined_call_operand.hbm [shape: f32[1,768], index: 2, kind: input, shape index: {}]
  %s3 = inlined_call_operand.hbm [shape: f32[2,768], index: 3, kind: output, shape index: {}]
  %s4 = sld [smem:[#allocation0]]
  $region34: #{tpu_custom_call.1} parent=0
    _
  %s6 = ssub.s32 1, %s4
  %s7 = scalar_select 0, %s6, %s4
  $region1: #{tpu_custom_call.1} parent=0
    #allocation2 [shape = 'u8[6144]{0}', space=vmem, size = 0x1800, scoped, tag = 'input window, operand 0, single buffered']
    #allocation3 [shape = 's32[1]{0}', space=sflag, size = 0x4, scoped, tag = 'scoped memory for tpu_custom_call.1']
    #allocation4 [shape = 's32[1]{0}', space=sflag, size = 0x4, scoped, tag = 'scoped memory for tpu_custom_call.1']
    #allocation5 [shape = 'u8[1179648]{0}', space=vmem, size = 0x120000, scoped, tag = 'input window, operand 1, single buffered']
    #allocation6 [shape = 's32[1]{0}', space=sflag, size = 0x4, scoped, tag = 'scoped memory for tpu_custom_call.1']
    #allocation7 [shape = 'u8[3072]{0}', space=vmem, size = 0xc00, scoped, tag = 'input window, operand 2, single buffered']
    #allocation8 [shape = 'u8[6144]{0}', space=vmem, size = 0x1800, scoped, tag = 'output window, operand 0, single buffered']
    %8 = vsyncpa [#allocation3], 0
    %9 = vsyncpa [#allocation6], 0
    %10 = vsyncpa [#allocation4], 0
    // Predicated region
    $region2: #{tpu_custom_call.1} parent=1 // pred_check
      _
    $region3: #{tpu_custom_call.1} parent=1 // pred_check_branch
      %12 = sbr.rel (0) target = $region5
    $region4: #{tpu_custom_call.1} parent=1 // pred_region
      %14 = vsyncadd [#allocation3], 0
      %s16 = sshll.u32 %s0, 4
      %s17 = int_to_ptr.hbm [resolvable:$true] %s16
      %s18 = sshll.u32 [#allocation2], 4
      %s19 = int_to_ptr.vmem [resolvable:$true] %s18
      %21 = dma.hbm_to_vmem [thread:$0]  %s17, 192, %s19, [#allocation3]
    $region5: #{tpu_custom_call.1} parent=1 // pred_fallthru
      _
    // Predicated region
    $region6: #{tpu_custom_call.1} parent=1 // pred_check
      _
    $region7: #{tpu_custom_call.1} parent=1 // pred_check_branch
      %23 = sbr.rel (0) target = $region9
    $region8: #{tpu_custom_call.1} parent=1 // pred_region
      %25 = vsyncadd [#allocation6], 0
      %s26 = sshll.u32 %s1, 4
      %s27 = int_to_ptr.hbm [resolvable:$true] %s26
      %s28 = sshll.u32 [#allocation5], 4
      %s29 = int_to_ptr.vmem [resolvable:$true] %s28
      %34 = dma.hbm_to_vmem [thread:$0]  %s27, 36864, %s29, [#allocation6], 384, 384, 24
    $region9: #{tpu_custom_call.1} parent=1 // pred_fallthru
      _
    // Predicated region
    $region10: #{tpu_custom_call.1} parent=1 // pred_check
      _
    $region11: #{tpu_custom_call.1} parent=1 // pred_check_branch
      %36 = sbr.rel (0) target = $region13
    $region12: #{tpu_custom_call.1} parent=1 // pred_region
      %38 = vsyncadd [#allocation6], 0
      %s40 = sshll.u32 %s2, 4
      %s41 = int_to_ptr.hbm [resolvable:$true] %s40
      %s42 = sshll.u32 [#allocation7], 4
      %s43 = int_to_ptr.vmem [resolvable:$true] %s42
      %45 = dma.hbm_to_vmem [thread:$0]  %s41, 96, %s43, [#allocation6]
    $region13: #{tpu_custom_call.1} parent=1 // pred_fallthru
      _
    // Predicated region
    $region14: #{tpu_custom_call.1} parent=1 // pred_check
      _
    $region15: #{tpu_custom_call.1} parent=1 // pred_check_branch
      %47 = sbr.rel (0) target = $region17
    $region16: #{tpu_custom_call.1} parent=1 // pred_region
      %49 = dma.done [#allocation3], 192
    $region17: #{tpu_custom_call.1} parent=1 // pred_fallthru
      _
    // Predicated region
    $region18: #{tpu_custom_call.1} parent=1 // pred_check
      _
    $region19: #{tpu_custom_call.1} parent=1 // pred_check_branch
      %51 = sbr.rel (0) target = $region21
    $region20: #{tpu_custom_call.1} parent=1 // pred_region
      %53 = dma.done [#allocation6], 36864
    $region21: #{tpu_custom_call.1} parent=1 // pred_fallthru
      _
    // Predicated region
    $region22: #{tpu_custom_call.1} parent=1 // pred_check
      _
    $region23: #{tpu_custom_call.1} parent=1 // pred_check_branch
      %55 = sbr.rel (0) target = $region25
    $region24: #{tpu_custom_call.1} parent=1 // pred_region
      %57 = dma.done [#allocation6], 96
    $region25: #{tpu_custom_call.1} parent=1 // pred_fallthru
      _
    %v58 = vld [vmem:[#allocation2] sm:$0xff]
    %v59 = vld [vmem:[#allocation2 + $0x8] sm:$0xf]
    %62 = vst [vmem:[#allocation1] ss:$4 sm:$0xff] %v58
    %s63 = scalar_lea.vmem [#allocation1], 32
    %64 = vst [vmem:[%s63] ss:$4 sm:$0xff] %v59
    %v65 = vld.sshfl [vmem:[#allocation1] sm:$0xff pattern:$0x73625140]
    %v66 = vld.sshfl [vmem:[#allocation1 + $0x8] sm:$0xff pattern:$0x73625140]
    %v67 = vld.sshfl [vmem:[#allocation1 + $0x10] sm:$0xff pattern:$0x73625140]
    %v68 = vld.sshfl [vmem:[#allocation1 + $0x18] sm:$0xff pattern:$0x73625140]
    %v69 = vld.sshfl [vmem:[#allocation1 + $0x20] sm:$0xff pattern:$0x73625140]
    %v70 = vld.sshfl [vmem:[#allocation1 + $0x28] sm:$0xff pattern:$0x73625140]
    %v77 = vpack.c.bf16 %v65, %v65
    %v78 = vpack.c.bf16 %v66, %v66
    %v79 = vpack.c.bf16 %v67, %v67
    %v80 = vpack.c.bf16 %v68, %v68
    %v81 = vpack.c.bf16 %v69, %v69
    %v82 = vpack.c.bf16 %v70, %v70
    %v83 = vld [vmem:[#allocation5] sm:$0xff]
    %v84 = vld [vmem:[#allocation5 + $0x8] sm:$0xff]
    %v85 = vld [vmem:[#allocation5 + $0x10] sm:$0xff]
    %v86 = vld [vmem:[#allocation5 + $0x18] sm:$0xff]
    %v87 = vld [vmem:[#allocation5 + $0x20] sm:$0xff]
    %v88 = vld [vmem:[#allocation5 + $0x28] sm:$0xff]
    %v89 = vld [vmem:[#allocation5 + $0x30] sm:$0xff]
    %v90 = vld [vmem:[#allocation5 + $0x38] sm:$0xff]
    %v91 = vld [vmem:[#allocation5 + $0x40] sm:$0xff]
    %v92 = vld [vmem:[#allocation5 + $0x48] sm:$0xff]
    %v93 = vld [vmem:[#allocation5 + $0x50] sm:$0xff]
    %v94 = vld [vmem:[#allocation5 + $0x58] sm:$0xff]
    %v95 = vld [vmem:[#allocation5 + $0x60] sm:$0xff]
    %v96 = vld [vmem:[#allocation5 + $0x68] sm:$0xff]
    %v97 = vld [vmem:[#allocation5 + $0x70] sm:$0xff]
    %v98 = vld [vmem:[#allocation5 + $0x78] sm:$0xff]
    %v99 = vld [vmem:[#allocation5 + $0x80] sm:$0xff]
    %v100 = vld [vmem:[#allocation5 + $0x88] sm:$0xff]
    %v101 = vld [vmem:[#allocation5 + $0x90] sm:$0xff]
    %v102 = vld [vmem:[#allocation5 + $0x98] sm:$0xff]
    %v103 = vld [vmem:[#allocation5 + $0xa0] sm:$0xff]
    %v104 = vld [vmem:[#allocation5 + $0xa8] sm:$0xff]
    %v105 = vld [vmem:[#allocation5 + $0xb0] sm:$0xff]
    %v106 = vld [vmem:[#allocation5 + $0xb8] sm:$0xff]
    %v107 = vld [vmem:[#allocation5 + $0xc0] sm:$0xff]
    %v108 = vld [vmem:[#allocation5 + $0xc8] sm:$0xff]
    %v109 = vld [vmem:[#allocation5 + $0xd0] sm:$0xff]
    %v110 = vld [vmem:[#allocation5 + $0xd8] sm:$0xff]
    %v111 = vld [vmem:[#allocation5 + $0xe0] sm:$0xff]
    %v112 = vld [vmem:[#allocation5 + $0xe8] sm:$0xff]
    %v113 = vld [vmem:[#allocation5 + $0xf0] sm:$0xff]
    %v114 = vld [vmem:[#allocation5 + $0xf8] sm:$0xff]
    %v115 = vld [vmem:[#allocation5 + $0x100] sm:$0xff]
    %v116 = vld [vmem:[#allocation5 + $0x108] sm:$0xff]
    %v117 = vld [vmem:[#allocation5 + $0x110] sm:$0xff]
    %v118 = vld [vmem:[#allocation5 + $0x118] sm:$0xff]
    %v119 = vld [vmem:[#allocation5 + $0x120] sm:$0xff]
    %v120 = vld [vmem:[#allocation5 + $0x128] sm:$0xff]
    %v121 = vld [vmem:[#allocation5 + $0x130] sm:$0xff]
    %v122 = vld [vmem:[#allocation5 + $0x138] sm:$0xff]
    %v123 = vld [vmem:[#allocation5 + $0x140] sm:$0xff]
    %v124 = vld [vmem:[#allocation5 + $0x148] sm:$0xff]
    %v125 = vld [vmem:[#allocation5 + $0x150] sm:$0xff]
    %v126 = vld [vmem:[#allocation5 + $0x158] sm:$0xff]
    %v127 = vld [vmem:[#allocation5 + $0x160] sm:$0xff]
    %v128 = vld [vmem:[#allocation5 + $0x168] sm:$0xff]
    %v129 = vld [vmem:[#allocation5 + $0x170] sm:$0xff]
    %v130 = vld [vmem:[#allocation5 + $0x178] sm:$0xff]
    %v131 = vld [vmem:[#allocation5 + $0x180] sm:$0xff]
    %v132 = vld [vmem:[#allocation5 + $0x188] sm:$0xff]
    %v133 = vld [vmem:[#allocation5 + $0x190] sm:$0xff]
    %v134 = vld [vmem:[#allocation5 + $0x198] sm:$0xff]
    %v135 = vld [vmem:[#allocation5 + $0x1a0] sm:$0xff]
    %v136 = vld [vmem:[#allocation5 + $0x1a8] sm:$0xff]
    %v137 = vld [vmem:[#allocation5 + $0x1b0] sm:$0xff]
    %v138 = vld [vmem:[#allocation5 + $0x1b8] sm:$0xff]
    %v139 = vld [vmem:[#allocation5 + $0x1c0] sm:$0xff]
    %v140 = vld [vmem:[#allocation5 + $0x1c8] sm:$0xff]
    %v141 = vld [vmem:[#allocation5 + $0x1d0] sm:$0xff]
    %v142 = vld [vmem:[#allocation5 + $0x1d8] sm:$0xff]
    %v143 = vld [vmem:[#allocation5 + $0x1e0] sm:$0xff]
    %v144 = vld [vmem:[#allocation5 + $0x1e8] sm:$0xff]
    %v145 = vld [vmem:[#allocation5 + $0x1f0] sm:$0xff]
    %v146 = vld [vmem:[#allocation5 + $0x1f8] sm:$0xff]
    %v147 = vld [vmem:[#allocation5 + $0x200] sm:$0xff]
    %v148 = vld [vmem:[#allocation5 + $0x208] sm:$0xff]
    %v149 = vld [vmem:[#allocation5 + $0x210] sm:$0xff]
    %v150 = vld [vmem:[#allocation5 + $0x218] sm:$0xff]
    %v151 = vld [vmem:[#allocation5 + $0x220] sm:$0xff]
    %v152 = vld [vmem:[#allocation5 + $0x228] sm:$0xff]
    %v153 = vld [vmem:[#allocation5 + $0x230] sm:$0xff]
    %v154 = vld [vmem:[#allocation5 + $0x238] sm:$0xff]
    %v155 = vld [vmem:[#allocation5 + $0x240] sm:$0xff]
    %v156 = vld [vmem:[#allocation5 + $0x248] sm:$0xff]
    %v157 = vld [vmem:[#allocation5 + $0x250] sm:$0xff]
    %v158 = vld [vmem:[#allocation5 + $0x258] sm:$0xff]
    %v159 = vld [vmem:[#allocation5 + $0x260] sm:$0xff]
    %v160 = vld [vmem:[#allocation5 + $0x268] sm:$0xff]
    %v161 = vld [vmem:[#allocation5 + $0x270] sm:$0xff]
    %v162 = vld [vmem:[#allocation5 + $0x278] sm:$0xff]
    %v163 = vld [vmem:[#allocation5 + $0x280] sm:$0xff]
    %v164 = vld [vmem:[#allocation5 + $0x288] sm:$0xff]
    %v165 = vld [vmem:[#allocation5 + $0x290] sm:$0xff]
    %v166 = vld [vmem:[#allocation5 + $0x298] sm:$0xff]
    %v167 = vld [vmem:[#allocation5 + $0x2a0] sm:$0xff]
    %v168 = vld [vmem:[#allocation5 + $0x2a8] sm:$0xff]
    %v169 = vld [vmem:[#allocation5 + $0x2b0] sm:$0xff]
    %v170 = vld [vmem:[#allocation5 + $0x2b8] sm:$0xff]
    %v171 = vld [vmem:[#allocation5 + $0x2c0] sm:$0xff]
    %v172 = vld [vmem:[#allocation5 + $0x2c8] sm:$0xff]
    %v173 = vld [vmem:[#allocation5 + $0x2d0] sm:$0xff]
    %v174 = vld [vmem:[#allocation5 + $0x2d8] sm:$0xff]
    %v175 = vld [vmem:[#allocation5 + $0x2e0] sm:$0xff]
    %v176 = vld [vmem:[#allocation5 + $0x2e8] sm:$0xff]
    %v177 = vld [vmem:[#allocation5 + $0x2f0] sm:$0xff]
    %v178 = vld [vmem:[#allocation5 + $0x2f8] sm:$0xff]
    %v179 = vld [vmem:[#allocation5 + $0x300] sm:$0xff]
    %v180 = vld [vmem:[#allocation5 + $0x308] sm:$0xff]
    %v181 = vld [vmem:[#allocation5 + $0x310] sm:$0xff]
    %v182 = vld [vmem:[#allocation5 + $0x318] sm:$0xff]
    %v183 = vld [vmem:[#allocation5 + $0x320] sm:$0xff]
    %v184 = vld [vmem:[#allocation5 + $0x328] sm:$0xff]
    %v185 = vld [vmem:[#allocation5 + $0x330] sm:$0xff]
    %v186 = vld [vmem:[#allocation5 + $0x338] sm:$0xff]
    %v187 = vld [vmem:[#allocation5 + $0x340] sm:$0xff]
    %v188 = vld [vmem:[#allocation5 + $0x348] sm:$0xff]
    %v189 = vld [vmem:[#allocation5 + $0x350] sm:$0xff]
    %v190 = vld [vmem:[#allocation5 + $0x358] sm:$0xff]
    %v191 = vld [vmem:[#allocation5 + $0x360] sm:$0xff]
    %v192 = vld [vmem:[#allocation5 + $0x368] sm:$0xff]
    %v193 = vld [vmem:[#allocation5 + $0x370] sm:$0xff]
    %v194 = vld [vmem:[#allocation5 + $0x378] sm:$0xff]
    %v195 = vld [vmem:[#allocation5 + $0x380] sm:$0xff]
    %v196 = vld [vmem:[#allocation5 + $0x388] sm:$0xff]
    %v197 = vld [vmem:[#allocation5 + $0x390] sm:$0xff]
    %v198 = vld [vmem:[#allocation5 + $0x398] sm:$0xff]
    %v199 = vld [vmem:[#allocation5 + $0x3a0] sm:$0xff]
    %v200 = vld [vmem:[#allocation5 + $0x3a8] sm:$0xff]
    %v201 = vld [vmem:[#allocation5 + $0x3b0] sm:$0xff]
    %v202 = vld [vmem:[#allocation5 + $0x3b8] sm:$0xff]
    %v203 = vld [vmem:[#allocation5 + $0x3c0] sm:$0xff]
    %v204 = vld [vmem:[#allocation5 + $0x3c8] sm:$0xff]
    %v205 = vld [vmem:[#allocation5 + $0x3d0] sm:$0xff]
    %v206 = vld [vmem:[#allocation5 + $0x3d8] sm:$0xff]
    %v207 = vld [vmem:[#allocation5 + $0x3e0] sm:$0xff]
    %v208 = vld [vmem:[#allocation5 + $0x3e8] sm:$0xff]
    %v209 = vld [vmem:[#allocation5 + $0x3f0] sm:$0xff]
    %v210 = vld [vmem:[#allocation5 + $0x3f8] sm:$0xff]
    %v211 = vld [vmem:[#allocation5 + $0x400] sm:$0xff]
    %v212 = vld [vmem:[#allocation5 + $0x408] sm:$0xff]
    %v213 = vld [vmem:[#allocation5 + $0x410] sm:$0xff]
    %v214 = vld [vmem:[#allocation5 + $0x418] sm:$0xff]
    %v215 = vld [vmem:[#allocation5 + $0x420] sm:$0xff]
    %v216 = vld [vmem:[#allocation5 + $0x428] sm:$0xff]
    %v217 = vld [vmem:[#allocation5 + $0x430] sm:$0xff]
    %v218 = vld [vmem:[#allocation5 + $0x438] sm:$0xff]
    %v219 = vld [vmem:[#allocation5 + $0x440] sm:$0xff]
    %v220 = vld [vmem:[#allocation5 + $0x448] sm:$0xff]
    %v221 = vld [vmem:[#allocation5 + $0x450] sm:$0xff]
    %v222 = vld [vmem:[#allocation5 + $0x458] sm:$0xff]
    %v223 = vld [vmem:[#allocation5 + $0x460] sm:$0xff]
    %v224 = vld [vmem:[#allocation5 + $0x468] sm:$0xff]
    %v225 = vld [vmem:[#allocation5 + $0x470] sm:$0xff]
    %v226 = vld [vmem:[#allocation5 + $0x478] sm:$0xff]
    %v227 = vld [vmem:[#allocation5 + $0x480] sm:$0xff]
    %v228 = vld [vmem:[#allocation5 + $0x488] sm:$0xff]
    %v229 = vld [vmem:[#allocation5 + $0x490] sm:$0xff]
    %v230 = vld [vmem:[#allocation5 + $0x498] sm:$0xff]
    %v231 = vld [vmem:[#allocation5 + $0x4a0] sm:$0xff]
    %v232 = vld [vmem:[#allocation5 + $0x4a8] sm:$0xff]
    %v233 = vld [vmem:[#allocation5 + $0x4b0] sm:$0xff]
    %v234 = vld [vmem:[#allocation5 + $0x4b8] sm:$0xff]
    %v235 = vld [vmem:[#allocation5 + $0x4c0] sm:$0xff]
    %v236 = vld [vmem:[#allocation5 + $0x4c8] sm:$0xff]
    %v237 = vld [vmem:[#allocation5 + $0x4d0] sm:$0xff]
    %v238 = vld [vmem:[#allocation5 + $0x4d8] sm:$0xff]
    %v239 = vld [vmem:[#allocation5 + $0x4e0] sm:$0xff]
    %v240 = vld [vmem:[#allocation5 + $0x4e8] sm:$0xff]
    %v241 = vld [vmem:[#allocation5 + $0x4f0] sm:$0xff]
    %v242 = vld [vmem:[#allocation5 + $0x4f8] sm:$0xff]
    %v243 = vld [vmem:[#allocation5 + $0x500] sm:$0xff]
    %v244 = vld [vmem:[#allocation5 + $0x508] sm:$0xff]
    %v245 = vld [vmem:[#allocation5 + $0x510] sm:$0xff]
    %v246 = vld [vmem:[#allocation5 + $0x518] sm:$0xff]
    %v247 = vld [vmem:[#allocation5 + $0x520] sm:$0xff]
    %v248 = vld [vmem:[#allocation5 + $0x528] sm:$0xff]
    %v249 = vld [vmem:[#allocation5 + $0x530] sm:$0xff]
    %v250 = vld [vmem:[#allocation5 + $0x538] sm:$0xff]
    %v251 = vld [vmem:[#allocation5 + $0x540] sm:$0xff]
    %v252 = vld [vmem:[#allocation5 + $0x548] sm:$0xff]
    %v253 = vld [vmem:[#allocation5 + $0x550] sm:$0xff]
    %v254 = vld [vmem:[#allocation5 + $0x558] sm:$0xff]
    %v255 = vld [vmem:[#allocation5 + $0x560] sm:$0xff]
    %v256 = vld [vmem:[#allocation5 + $0x568] sm:$0xff]
    %v257 = vld [vmem:[#allocation5 + $0x570] sm:$0xff]
    %v258 = vld [vmem:[#allocation5 + $0x578] sm:$0xff]
    %v259 = vld [vmem:[#allocation5 + $0x580] sm:$0xff]
    %v260 = vld [vmem:[#allocation5 + $0x588] sm:$0xff]
    %v261 = vld [vmem:[#allocation5 + $0x590] sm:$0xff]
    %v262 = vld [vmem:[#allocation5 + $0x598] sm:$0xff]
    %v263 = vld [vmem:[#allocation5 + $0x5a0] sm:$0xff]
    %v264 = vld [vmem:[#allocation5 + $0x5a8] sm:$0xff]
    %v265 = vld [vmem:[#allocation5 + $0x5b0] sm:$0xff]
    %v266 = vld [vmem:[#allocation5 + $0x5b8] sm:$0xff]
    %v267 = vld [vmem:[#allocation5 + $0x5c0] sm:$0xff]
    %v268 = vld [vmem:[#allocation5 + $0x5c8] sm:$0xff]
    %v269 = vld [vmem:[#allocation5 + $0x5d0] sm:$0xff]
    %v270 = vld [vmem:[#allocation5 + $0x5d8] sm:$0xff]
    %v271 = vld [vmem:[#allocation5 + $0x5e0] sm:$0xff]
    %v272 = vld [vmem:[#allocation5 + $0x5e8] sm:$0xff]
    %v273 = vld [vmem:[#allocation5 + $0x5f0] sm:$0xff]
    %v274 = vld [vmem:[#allocation5 + $0x5f8] sm:$0xff]
    %v275 = vld [vmem:[#allocation5 + $0x600] sm:$0xff]
    %v276 = vld [vmem:[#allocation5 + $0x608] sm:$0xff]
    %v277 = vld [vmem:[#allocation5 + $0x610] sm:$0xff]
    %v278 = vld [vmem:[#allocation5 + $0x618] sm:$0xff]
    %v279 = vld [vmem:[#allocation5 + $0x620] sm:$0xff]
    %v280 = vld [vmem:[#allocation5 + $0x628] sm:$0xff]
    %v281 = vld [vmem:[#allocation5 + $0x630] sm:$0xff]
    %v282 = vld [vmem:[#allocation5 + $0x638] sm:$0xff]
    %v283 = vld [vmem:[#allocation5 + $0x640] sm:$0xff]
    %v284 = vld [vmem:[#allocation5 + $0x648] sm:$0xff]
    %v285 = vld [vmem:[#allocation5 + $0x650] sm:$0xff]
    %v286 = vld [vmem:[#allocation5 + $0x658] sm:$0xff]
    %v287 = vld [vmem:[#allocation5 + $0x660] sm:$0xff]
    %v288 = vld [vmem:[#allocation5 + $0x668] sm:$0xff]
    %v289 = vld [vmem:[#allocation5 + $0x670] sm:$0xff]
    %v290 = vld [vmem:[#allocation5 + $0x678] sm:$0xff]
    %v291 = vld [vmem:[#allocation5 + $0x680] sm:$0xff]
    %v292 = vld [vmem:[#allocation5 + $0x688] sm:$0xff]
    %v293 = vld [vmem:[#allocation5 + $0x690] sm:$0xff]
    %v294 = vld [vmem:[#allocation5 + $0x698] sm:$0xff]
    %v295 = vld [vmem:[#allocation5 + $0x6a0] sm:$0xff]
    %v296 = vld [vmem:[#allocation5 + $0x6a8] sm:$0xff]
    %v297 = vld [vmem:[#allocation5 + $0x6b0] sm:$0xff]
    %v298 = vld [vmem:[#allocation5 + $0x6b8] sm:$0xff]
    %v299 = vld [vmem:[#allocation5 + $0x6c0] sm:$0xff]
    %v300 = vld [vmem:[#allocation5 + $0x6c8] sm:$0xff]
    %v301 = vld [vmem:[#allocation5 + $0x6d0] sm:$0xff]
    %v302 = vld [vmem:[#allocation5 + $0x6d8] sm:$0xff]
    %v303 = vld [vmem:[#allocation5 + $0x6e0] sm:$0xff]
    %v304 = vld [vmem:[#allocation5 + $0x6e8] sm:$0xff]
    %v305 = vld [vmem:[#allocation5 + $0x6f0] sm:$0xff]
    %v306 = vld [vmem:[#allocation5 + $0x6f8] sm:$0xff]
    %v307 = vld [vmem:[#allocation5 + $0x700] sm:$0xff]
    %v308 = vld [vmem:[#allocation5 + $0x708] sm:$0xff]
    %v309 = vld [vmem:[#allocation5 + $0x710] sm:$0xff]
    %v310 = vld [vmem:[#allocation5 + $0x718] sm:$0xff]
    %v311 = vld [vmem:[#allocation5 + $0x720] sm:$0xff]
    %v312 = vld [vmem:[#allocation5 + $0x728] sm:$0xff]
    %v313 = vld [vmem:[#allocation5 + $0x730] sm:$0xff]
    %v314 = vld [vmem:[#allocation5 + $0x738] sm:$0xff]
    %v315 = vld [vmem:[#allocation5 + $0x740] sm:$0xff]
    %v316 = vld [vmem:[#allocation5 + $0x748] sm:$0xff]
    %v317 = vld [vmem:[#allocation5 + $0x750] sm:$0xff]
    %v318 = vld [vmem:[#allocation5 + $0x758] sm:$0xff]
    %v319 = vld [vmem:[#allocation5 + $0x760] sm:$0xff]
    %v320 = vld [vmem:[#allocation5 + $0x768] sm:$0xff]
    %v321 = vld [vmem:[#allocation5 + $0x770] sm:$0xff]
    %v322 = vld [vmem:[#allocation5 + $0x778] sm:$0xff]
    %v323 = vld [vmem:[#allocation5 + $0x780] sm:$0xff]
    %v324 = vld [vmem:[#allocation5 + $0x788] sm:$0xff]
    %v325 = vld [vmem:[#allocation5 + $0x790] sm:$0xff]
    %v326 = vld [vmem:[#allocation5 + $0x798] sm:$0xff]
    %v327 = vld [vmem:[#allocation5 + $0x7a0] sm:$0xff]
    %v328 = vld [vmem:[#allocation5 + $0x7a8] sm:$0xff]
    %v329 = vld [vmem:[#allocation5 + $0x7b0] sm:$0xff]
    %v330 = vld [vmem:[#allocation5 + $0x7b8] sm:$0xff]
    %v331 = vld [vmem:[#allocation5 + $0x7c0] sm:$0xff]
    %v332 = vld [vmem:[#allocation5 + $0x7c8] sm:$0xff]
    %v333 = vld [vmem:[#allocation5 + $0x7d0] sm:$0xff]
    %v334 = vld [vmem:[#allocation5 + $0x7d8] sm:$0xff]
    %v335 = vld [vmem:[#allocation5 + $0x7e0] sm:$0xff]
    %v336 = vld [vmem:[#allocation5 + $0x7e8] sm:$0xff]
    %v337 = vld [vmem:[#allocation5 + $0x7f0] sm:$0xff]
    %v338 = vld [vmem:[#allocation5 + $0x7f8] sm:$0xff]
    %v339 = vld [vmem:[#allocation5 + $0x800] sm:$0xff]
    %v340 = vld [vmem:[#allocation5 + $0x808] sm:$0xff]
    %v341 = vld [vmem:[#allocation5 + $0x810] sm:$0xff]
    %v342 = vld [vmem:[#allocation5 + $0x818] sm:$0xff]
    %v343 = vld [vmem:[#allocation5 + $0x820] sm:$0xff]
    %v344 = vld [vmem:[#allocation5 + $0x828] sm:$0xff]
    %v345 = vld [vmem:[#allocation5 + $0x830] sm:$0xff]
    %v346 = vld [vmem:[#allocation5 + $0x838] sm:$0xff]
    %v347 = vld [vmem:[#allocation5 + $0x840] sm:$0xff]
    %v348 = vld [vmem:[#allocation5 + $0x848] sm:$0xff]
    %v349 = vld [vmem:[#allocation5 + $0x850] sm:$0xff]
    %v350 = vld [vmem:[#allocation5 + $0x858] sm:$0xff]
    %v351 = vld [vmem:[#allocation5 + $0x860] sm:$0xff]
    %v352 = vld [vmem:[#allocation5 + $0x868] sm:$0xff]
    %v353 = vld [vmem:[#allocation5 + $0x870] sm:$0xff]
    %v354 = vld [vmem:[#allocation5 + $0x878] sm:$0xff]
    %v355 = vld [vmem:[#allocation5 + $0x880] sm:$0xff]
    %v356 = vld [vmem:[#allocation5 + $0x888] sm:$0xff]
    %v357 = vld [vmem:[#allocation5 + $0x890] sm:$0xff]
    %v358 = vld [vmem:[#allocation5 + $0x898] sm:$0xff]
    %v359 = vld [vmem:[#allocation5 + $0x8a0] sm:$0xff]
    %v360 = vld [vmem:[#allocation5 + $0x8a8] sm:$0xff]
    %v361 = vld [vmem:[#allocation5 + $0x8b0] sm:$0xff]
    %v362 = vld [vmem:[#allocation5 + $0x8b8] sm:$0xff]
    %v363 = vld [vmem:[#allocation5 + $0x8c0] sm:$0xff]
    %v364 = vld [vmem:[#allocation5 + $0x8c8] sm:$0xff]
    %v365 = vld [vmem:[#allocation5 + $0x8d0] sm:$0xff]
    %v366 = vld [vmem:[#allocation5 + $0x8d8] sm:$0xff]
    %v367 = vld [vmem:[#allocation5 + $0x8e0] sm:$0xff]
    %v368 = vld [vmem:[#allocation5 + $0x8e8] sm:$0xff]
    %v369 = vld [vmem:[#allocation5 + $0x8f0] sm:$0xff]
    %v370 = vld [vmem:[#allocation5 + $0x8f8] sm:$0xff]
    %v371 = vld [vmem:[#allocation7] sm:$0x3f]
    %v373 = vperm.slane %v371, 0
    %v374 = vperm.slane %v371, 1
    %v375 = vperm.slane %v371, 2
    %v376 = vperm.slane %v371, 3
    %v377 = vperm.slane %v371, 4
    %v378 = vperm.slane %v371, 5
    %v673 = vunpack.c.l.b16 %v83
    %v674 = vunpack.c.h.b16 %v83
    %v675 = vunpack.c.l.b16 %v84
    %v676 = vunpack.c.h.b16 %v84
    %v677 = vunpack.c.l.b16 %v85
    %v678 = vunpack.c.h.b16 %v85
    %v679 = vunpack.c.l.b16 %v86
    %v680 = vunpack.c.h.b16 %v86
    %v681 = vunpack.c.l.b16 %v87
    %v682 = vunpack.c.h.b16 %v87
    %v683 = vunpack.c.l.b16 %v88
    %v684 = vunpack.c.h.b16 %v88
    %v685 = vunpack.c.l.b16 %v89
    %v686 = vunpack.c.h.b16 %v89
    %v687 = vunpack.c.l.b16 %v90
    %v688 = vunpack.c.h.b16 %v90
    %v689 = vunpack.c.l.b16 %v91
    %v690 = vunpack.c.h.b16 %v91
    %v691 = vunpack.c.l.b16 %v92
    %v692 = vunpack.c.h.b16 %v92
    %v693 = vunpack.c.l.b16 %v93
    %v694 = vunpack.c.h.b16 %v93
    %v695 = vunpack.c.l.b16 %v94
    %v696 = vunpack.c.h.b16 %v94
    %v697 = vunpack.c.l.b16 %v95
    %v698 = vunpack.c.h.b16 %v95
    %v699 = vunpack.c.l.b16 %v96
    %v700 = vunpack.c.h.b16 %v96
    %v701 = vunpack.c.l.b16 %v97
    %v702 = vunpack.c.h.b16 %v97
    %v703 = vunpack.c.l.b16 %v98
    %v704 = vunpack.c.h.b16 %v98
    %v705 = vunpack.c.l.b16 %v99
    %v706 = vunpack.c.h.b16 %v99
    %v707 = vunpack.c.l.b16 %v100
    %v708 = vunpack.c.h.b16 %v100
    %v709 = vunpack.c.l.b16 %v101
    %v710 = vunpack.c.h.b16 %v101
    %v711 = vunpack.c.l.b16 %v102
    %v712 = vunpack.c.h.b16 %v102
    %v713 = vunpack.c.l.b16 %v103
    %v714 = vunpack.c.h.b16 %v103
    %v715 = vunpack.c.l.b16 %v104
    %v716 = vunpack.c.h.b16 %v104
    %v717 = vunpack.c.l.b16 %v105
    %v718 = vunpack.c.h.b16 %v105
    %v719 = vunpack.c.l.b16 %v106
    %v720 = vunpack.c.h.b16 %v106
    %v721 = vunpack.c.l.b16 %v107
    %v722 = vunpack.c.h.b16 %v107
    %v723 = vunpack.c.l.b16 %v108
    %v724 = vunpack.c.h.b16 %v108
    %v725 = vunpack.c.l.b16 %v109
    %v726 = vunpack.c.h.b16 %v109
    %v727 = vunpack.c.l.b16 %v110
    %v728 = vunpack.c.h.b16 %v110
    %v729 = vunpack.c.l.b16 %v111
    %v730 = vunpack.c.h.b16 %v111
    %v731 = vunpack.c.l.b16 %v112
    %v732 = vunpack.c.h.b16 %v112
    %v733 = vunpack.c.l.b16 %v113
    %v734 = vunpack.c.h.b16 %v113
    %v735 = vunpack.c.l.b16 %v114
    %v736 = vunpack.c.h.b16 %v114
    %v737 = vunpack.c.l.b16 %v115
    %v738 = vunpack.c.h.b16 %v115
    %v739 = vunpack.c.l.b16 %v116
    %v740 = vunpack.c.h.b16 %v116
    %v741 = vunpack.c.l.b16 %v117
    %v742 = vunpack.c.h.b16 %v117
    %v743 = vunpack.c.l.b16 %v118
    %v744 = vunpack.c.h.b16 %v118
    %v745 = vunpack.c.l.b16 %v119
    %v746 = vunpack.c.h.b16 %v119
    %v747 = vunpack.c.l.b16 %v120
    %v748 = vunpack.c.h.b16 %v120
    %v749 = vunpack.c.l.b16 %v121
    %v750 = vunpack.c.h.b16 %v121
    %v751 = vunpack.c.l.b16 %v122
    %v752 = vunpack.c.h.b16 %v122
    %v753 = vunpack.c.l.b16 %v123
    %v754 = vunpack.c.h.b16 %v123
    %v755 = vunpack.c.l.b16 %v124
    %v756 = vunpack.c.h.b16 %v124
    %v757 = vunpack.c.l.b16 %v125
    %v758 = vunpack.c.h.b16 %v125
    %v759 = vunpack.c.l.b16 %v126
    %v760 = vunpack.c.h.b16 %v126
    %v761 = vunpack.c.l.b16 %v127
    %v762 = vunpack.c.h.b16 %v127
    %v763 = vunpack.c.l.b16 %v128
    %v764 = vunpack.c.h.b16 %v128
    %v765 = vunpack.c.l.b16 %v129
    %v766 = vunpack.c.h.b16 %v129
    %v767 = vunpack.c.l.b16 %v130
    %v768 = vunpack.c.h.b16 %v130
    %v769 = vunpack.c.l.b16 %v131
    %v770 = vunpack.c.h.b16 %v131
    %v771 = vunpack.c.l.b16 %v132
    %v772 = vunpack.c.h.b16 %v132
    %v773 = vunpack.c.l.b16 %v133
    %v774 = vunpack.c.h.b16 %v133
    %v775 = vunpack.c.l.b16 %v134
    %v776 = vunpack.c.h.b16 %v134
    %v777 = vunpack.c.l.b16 %v135
    %v778 = vunpack.c.h.b16 %v135
    %v779 = vunpack.c.l.b16 %v136
    %v780 = vunpack.c.h.b16 %v136
    %v781 = vunpack.c.l.b16 %v137
    %v782 = vunpack.c.h.b16 %v137
    %v783 = vunpack.c.l.b16 %v138
    %v784 = vunpack.c.h.b16 %v138
    %v785 = vunpack.c.l.b16 %v139
    %v786 = vunpack.c.h.b16 %v139
    %v787 = vunpack.c.l.b16 %v140
    %v788 = vunpack.c.h.b16 %v140
    %v789 = vunpack.c.l.b16 %v141
    %v790 = vunpack.c.h.b16 %v141
    %v791 = vunpack.c.l.b16 %v142
    %v792 = vunpack.c.h.b16 %v142
    %v793 = vunpack.c.l.b16 %v143
    %v794 = vunpack.c.h.b16 %v143
    %v795 = vunpack.c.l.b16 %v144
    %v796 = vunpack.c.h.b16 %v144
    %v797 = vunpack.c.l.b16 %v145
    %v798 = vunpack.c.h.b16 %v145
    %v799 = vunpack.c.l.b16 %v146
    %v800 = vunpack.c.h.b16 %v146
    %v801 = vunpack.c.l.b16 %v147
    %v802 = vunpack.c.h.b16 %v147
    %v803 = vunpack.c.l.b16 %v148
    %v804 = vunpack.c.h.b16 %v148
    %v805 = vunpack.c.l.b16 %v149
    %v806 = vunpack.c.h.b16 %v149
    %v807 = vunpack.c.l.b16 %v150
    %v808 = vunpack.c.h.b16 %v150
    %v809 = vunpack.c.l.b16 %v151
    %v810 = vunpack.c.h.b16 %v151
    %v811 = vunpack.c.l.b16 %v152
    %v812 = vunpack.c.h.b16 %v152
    %v813 = vunpack.c.l.b16 %v153
    %v814 = vunpack.c.h.b16 %v153
    %v815 = vunpack.c.l.b16 %v154
    %v816 = vunpack.c.h.b16 %v154
    %v817 = vunpack.c.l.b16 %v155
    %v818 = vunpack.c.h.b16 %v155
    %v819 = vunpack.c.l.b16 %v156
    %v820 = vunpack.c.h.b16 %v156
    %v821 = vunpack.c.l.b16 %v157
    %v822 = vunpack.c.h.b16 %v157
    %v823 = vunpack.c.l.b16 %v158
    %v824 = vunpack.c.h.b16 %v158
    %v825 = vunpack.c.l.b16 %v159
    %v826 = vunpack.c.h.b16 %v159
    %v827 = vunpack.c.l.b16 %v160
    %v828 = vunpack.c.h.b16 %v160
    %v829 = vunpack.c.l.b16 %v161
    %v830 = vunpack.c.h.b16 %v161
    %v831 = vunpack.c.l.b16 %v162
    %v832 = vunpack.c.h.b16 %v162
    %v833 = vunpack.c.l.b16 %v163
    %v834 = vunpack.c.h.b16 %v163
    %v835 = vunpack.c.l.b16 %v164
    %v836 = vunpack.c.h.b16 %v164
    %v837 = vunpack.c.l.b16 %v165
    %v838 = vunpack.c.h.b16 %v165
    %v839 = vunpack.c.l.b16 %v166
    %v840 = vunpack.c.h.b16 %v166
    %v841 = vunpack.c.l.b16 %v167
    %v842 = vunpack.c.h.b16 %v167
    %v843 = vunpack.c.l.b16 %v168
    %v844 = vunpack.c.h.b16 %v168
    %v845 = vunpack.c.l.b16 %v169
    %v846 = vunpack.c.h.b16 %v169
    %v847 = vunpack.c.l.b16 %v170
    %v848 = vunpack.c.h.b16 %v170
    %v849 = vunpack.c.l.b16 %v171
    %v850 = vunpack.c.h.b16 %v171
    %v851 = vunpack.c.l.b16 %v172
    %v852 = vunpack.c.h.b16 %v172
    %v853 = vunpack.c.l.b16 %v173
    %v854 = vunpack.c.h.b16 %v173
    %v855 = vunpack.c.l.b16 %v174
    %v856 = vunpack.c.h.b16 %v174
    %v857 = vunpack.c.l.b16 %v175
    %v858 = vunpack.c.h.b16 %v175
    %v859 = vunpack.c.l.b16 %v176
    %v860 = vunpack.c.h.b16 %v176
    %v861 = vunpack.c.l.b16 %v177
    %v862 = vunpack.c.h.b16 %v177
    %v863 = vunpack.c.l.b16 %v178
    %v864 = vunpack.c.h.b16 %v178
    %v865 = vunpack.c.l.b16 %v179
    %v866 = vunpack.c.h.b16 %v179
    %v867 = vunpack.c.l.b16 %v180
    %v868 = vunpack.c.h.b16 %v180
    %v869 = vunpack.c.l.b16 %v181
    %v870 = vunpack.c.h.b16 %v181
    %v871 = vunpack.c.l.b16 %v182
    %v872 = vunpack.c.h.b16 %v182
    %v873 = vunpack.c.l.b16 %v183
    %v874 = vunpack.c.h.b16 %v183
    %v875 = vunpack.c.l.b16 %v184
    %v876 = vunpack.c.h.b16 %v184
    %v877 = vunpack.c.l.b16 %v185
    %v878 = vunpack.c.h.b16 %v185
    %v879 = vunpack.c.l.b16 %v186
    %v880 = vunpack.c.h.b16 %v186
    %v881 = vunpack.c.l.b16 %v187
    %v882 = vunpack.c.h.b16 %v187
    %v883 = vunpack.c.l.b16 %v188
    %v884 = vunpack.c.h.b16 %v188
    %v885 = vunpack.c.l.b16 %v189
    %v886 = vunpack.c.h.b16 %v189
    %v887 = vunpack.c.l.b16 %v190
    %v888 = vunpack.c.h.b16 %v190
    %v889 = vunpack.c.l.b16 %v191
    %v890 = vunpack.c.h.b16 %v191
    %v891 = vunpack.c.l.b16 %v192
    %v892 = vunpack.c.h.b16 %v192
    %v893 = vunpack.c.l.b16 %v193
    %v894 = vunpack.c.h.b16 %v193
    %v895 = vunpack.c.l.b16 %v194
    %v896 = vunpack.c.h.b16 %v194
    %v897 = vunpack.c.l.b16 %v195
    %v898 = vunpack.c.h.b16 %v195
    %v899 = vunpack.c.l.b16 %v196
    %v900 = vunpack.c.h.b16 %v196
    %v901 = vunpack.c.l.b16 %v197
    %v902 = vunpack.c.h.b16 %v197
    %v903 = vunpack.c.l.b16 %v198
    %v904 = vunpack.c.h.b16 %v198
    %v905 = vunpack.c.l.b16 %v199
    %v906 = vunpack.c.h.b16 %v199
    %v907 = vunpack.c.l.b16 %v200
    %v908 = vunpack.c.h.b16 %v200
    %v909 = vunpack.c.l.b16 %v201
    %v910 = vunpack.c.h.b16 %v201
    %v911 = vunpack.c.l.b16 %v202
    %v912 = vunpack.c.h.b16 %v202
    %v913 = vunpack.c.l.b16 %v203
    %v914 = vunpack.c.h.b16 %v203
    %v915 = vunpack.c.l.b16 %v204
    %v916 = vunpack.c.h.b16 %v204
    %v917 = vunpack.c.l.b16 %v205
    %v918 = vunpack.c.h.b16 %v205
    %v919 = vunpack.c.l.b16 %v206
    %v920 = vunpack.c.h.b16 %v206
    %v921 = vunpack.c.l.b16 %v207
    %v922 = vunpack.c.h.b16 %v207
    %v923 = vunpack.c.l.b16 %v208
    %v924 = vunpack.c.h.b16 %v208
    %v925 = vunpack.c.l.b16 %v209
    %v926 = vunpack.c.h.b16 %v209
    %v927 = vunpack.c.l.b16 %v210
    %v928 = vunpack.c.h.b16 %v210
    %v929 = vunpack.c.l.b16 %v211
    %v930 = vunpack.c.h.b16 %v211
    %v931 = vunpack.c.l.b16 %v212
    %v932 = vunpack.c.h.b16 %v212
    %v933 = vunpack.c.l.b16 %v213
    %v934 = vunpack.c.h.b16 %v213
    %v935 = vunpack.c.l.b16 %v214
    %v936 = vunpack.c.h.b16 %v214
    %v937 = vunpack.c.l.b16 %v215
    %v938 = vunpack.c.h.b16 %v215
    %v939 = vunpack.c.l.b16 %v216
    %v940 = vunpack.c.h.b16 %v216
    %v941 = vunpack.c.l.b16 %v217
    %v942 = vunpack.c.h.b16 %v217
    %v943 = vunpack.c.l.b16 %v218
    %v944 = vunpack.c.h.b16 %v218
    %v945 = vunpack.c.l.b16 %v219
    %v946 = vunpack.c.h.b16 %v219
    %v947 = vunpack.c.l.b16 %v220
    %v948 = vunpack.c.h.b16 %v220
    %v949 = vunpack.c.l.b16 %v221
    %v950 = vunpack.c.h.b16 %v221
    %v951 = vunpack.c.l.b16 %v222
    %v952 = vunpack.c.h.b16 %v222
    %v953 = vunpack.c.l.b16 %v223
    %v954 = vunpack.c.h.b16 %v223
    %v955 = vunpack.c.l.b16 %v224
    %v956 = vunpack.c.h.b16 %v224
    %v957 = vunpack.c.l.b16 %v225
    %v958 = vunpack.c.h.b16 %v225
    %v959 = vunpack.c.l.b16 %v226
    %v960 = vunpack.c.h.b16 %v226
    %v961 = vunpack.c.l.b16 %v227
    %v962 = vunpack.c.h.b16 %v227
    %v963 = vunpack.c.l.b16 %v228
    %v964 = vunpack.c.h.b16 %v228
    %v965 = vunpack.c.l.b16 %v229
    %v966 = vunpack.c.h.b16 %v229
    %v967 = vunpack.c.l.b16 %v230
    %v968 = vunpack.c.h.b16 %v230
    %v969 = vunpack.c.l.b16 %v231
    %v970 = vunpack.c.h.b16 %v231
    %v971 = vunpack.c.l.b16 %v232
    %v972 = vunpack.c.h.b16 %v232
    %v973 = vunpack.c.l.b16 %v233
    %v974 = vunpack.c.h.b16 %v233
    %v975 = vunpack.c.l.b16 %v234
    %v976 = vunpack.c.h.b16 %v234
    %v977 = vunpack.c.l.b16 %v235
    %v978 = vunpack.c.h.b16 %v235
    %v979 = vunpack.c.l.b16 %v236
    %v980 = vunpack.c.h.b16 %v236
    %v981 = vunpack.c.l.b16 %v237
    %v982 = vunpack.c.h.b16 %v237
    %v983 = vunpack.c.l.b16 %v238
    %v984 = vunpack.c.h.b16 %v238
    %v985 = vunpack.c.l.b16 %v239
    %v986 = vunpack.c.h.b16 %v239
    %v987 = vunpack.c.l.b16 %v240
    %v988 = vunpack.c.h.b16 %v240
    %v989 = vunpack.c.l.b16 %v241
    %v990 = vunpack.c.h.b16 %v241
    %v991 = vunpack.c.l.b16 %v242
    %v992 = vunpack.c.h.b16 %v242
    %v993 = vunpack.c.l.b16 %v243
    %v994 = vunpack.c.h.b16 %v243
    %v995 = vunpack.c.l.b16 %v244
    %v996 = vunpack.c.h.b16 %v244
    %v997 = vunpack.c.l.b16 %v245
    %v998 = vunpack.c.h.b16 %v245
    %v999 = vunpack.c.l.b16 %v246
    %v1000 = vunpack.c.h.b16 %v246
    %v1001 = vunpack.c.l.b16 %v247
    %v1002 = vunpack.c.h.b16 %v247
    %v1003 = vunpack.c.l.b16 %v248
    %v1004 = vunpack.c.h.b16 %v248
    %v1005 = vunpack.c.l.b16 %v249
    %v1006 = vunpack.c.h.b16 %v249
    %v1007 = vunpack.c.l.b16 %v250
    %v1008 = vunpack.c.h.b16 %v250
    %v1009 = vunpack.c.l.b16 %v251
    %v1010 = vunpack.c.h.b16 %v251
    %v1011 = vunpack.c.l.b16 %v252
    %v1012 = vunpack.c.h.b16 %v252
    %v1013 = vunpack.c.l.b16 %v253
    %v1014 = vunpack.c.h.b16 %v253
    %v1015 = vunpack.c.l.b16 %v254
    %v1016 = vunpack.c.h.b16 %v254
    %v1017 = vunpack.c.l.b16 %v255
    %v1018 = vunpack.c.h.b16 %v255
    %v1019 = vunpack.c.l.b16 %v256
    %v1020 = vunpack.c.h.b16 %v256
    %v1021 = vunpack.c.l.b16 %v257
    %v1022 = vunpack.c.h.b16 %v257
    %v1023 = vunpack.c.l.b16 %v258
    %v1024 = vunpack.c.h.b16 %v258
    %v1025 = vunpack.c.l.b16 %v259
    %v1026 = vunpack.c.h.b16 %v259
    %v1027 = vunpack.c.l.b16 %v260
    %v1028 = vunpack.c.h.b16 %v260
    %v1029 = vunpack.c.l.b16 %v261
    %v1030 = vunpack.c.h.b16 %v261
    %v1031 = vunpack.c.l.b16 %v262
    %v1032 = vunpack.c.h.b16 %v262
    %v1033 = vunpack.c.l.b16 %v263
    %v1034 = vunpack.c.h.b16 %v263
    %v1035 = vunpack.c.l.b16 %v264
    %v1036 = vunpack.c.h.b16 %v264
    %v1037 = vunpack.c.l.b16 %v265
    %v1038 = vunpack.c.h.b16 %v265
    %v1039 = vunpack.c.l.b16 %v266
    %v1040 = vunpack.c.h.b16 %v266
    %v1041 = vunpack.c.l.b16 %v267
    %v1042 = vunpack.c.h.b16 %v267
    %v1043 = vunpack.c.l.b16 %v268
    %v1044 = vunpack.c.h.b16 %v268
    %v1045 = vunpack.c.l.b16 %v269
    %v1046 = vunpack.c.h.b16 %v269
    %v1047 = vunpack.c.l.b16 %v270
    %v1048 = vunpack.c.h.b16 %v270
    %v1049 = vunpack.c.l.b16 %v271
    %v1050 = vunpack.c.h.b16 %v271
    %v1051 = vunpack.c.l.b16 %v272
    %v1052 = vunpack.c.h.b16 %v272
    %v1053 = vunpack.c.l.b16 %v273
    %v1054 = vunpack.c.h.b16 %v273
    %v1055 = vunpack.c.l.b16 %v274
    %v1056 = vunpack.c.h.b16 %v274
    %v1057 = vunpack.c.l.b16 %v275
    %v1058 = vunpack.c.h.b16 %v275
    %v1059 = vunpack.c.l.b16 %v276
    %v1060 = vunpack.c.h.b16 %v276
    %v1061 = vunpack.c.l.b16 %v277
    %v1062 = vunpack.c.h.b16 %v277
    %v1063 = vunpack.c.l.b16 %v278
    %v1064 = vunpack.c.h.b16 %v278
    %v1065 = vunpack.c.l.b16 %v279
    %v1066 = vunpack.c.h.b16 %v279
    %v1067 = vunpack.c.l.b16 %v280
    %v1068 = vunpack.c.h.b16 %v280
    %v1069 = vunpack.c.l.b16 %v281
    %v1070 = vunpack.c.h.b16 %v281
    %v1071 = vunpack.c.l.b16 %v282
    %v1072 = vunpack.c.h.b16 %v282
    %v1073 = vunpack.c.l.b16 %v283
    %v1074 = vunpack.c.h.b16 %v283
    %v1075 = vunpack.c.l.b16 %v284
    %v1076 = vunpack.c.h.b16 %v284
    %v1077 = vunpack.c.l.b16 %v285
    %v1078 = vunpack.c.h.b16 %v285
    %v1079 = vunpack.c.l.b16 %v286
    %v1080 = vunpack.c.h.b16 %v286
    %v1081 = vunpack.c.l.b16 %v287
    %v1082 = vunpack.c.h.b16 %v287
    %v1083 = vunpack.c.l.b16 %v288
    %v1084 = vunpack.c.h.b16 %v288
    %v1085 = vunpack.c.l.b16 %v289
    %v1086 = vunpack.c.h.b16 %v289
    %v1087 = vunpack.c.l.b16 %v290
    %v1088 = vunpack.c.h.b16 %v290
    %v1089 = vunpack.c.l.b16 %v291
    %v1090 = vunpack.c.h.b16 %v291
    %v1091 = vunpack.c.l.b16 %v292
    %v1092 = vunpack.c.h.b16 %v292
    %v1093 = vunpack.c.l.b16 %v293
    %v1094 = vunpack.c.h.b16 %v293
    %v1095 = vunpack.c.l.b16 %v294
    %v1096 = vunpack.c.h.b16 %v294
    %v1097 = vunpack.c.l.b16 %v295
    %v1098 = vunpack.c.h.b16 %v295
    %v1099 = vunpack.c.l.b16 %v296
    %v1100 = vunpack.c.h.b16 %v296
    %v1101 = vunpack.c.l.b16 %v297
    %v1102 = vunpack.c.h.b16 %v297
    %v1103 = vunpack.c.l.b16 %v298
    %v1104 = vunpack.c.h.b16 %v298
    %v1105 = vunpack.c.l.b16 %v299
    %v1106 = vunpack.c.h.b16 %v299
    %v1107 = vunpack.c.l.b16 %v300
    %v1108 = vunpack.c.h.b16 %v300
    %v1109 = vunpack.c.l.b16 %v301
    %v1110 = vunpack.c.h.b16 %v301
    %v1111 = vunpack.c.l.b16 %v302
    %v1112 = vunpack.c.h.b16 %v302
    %v1113 = vunpack.c.l.b16 %v303
    %v1114 = vunpack.c.h.b16 %v303
    %v1115 = vunpack.c.l.b16 %v304
    %v1116 = vunpack.c.h.b16 %v304
    %v1117 = vunpack.c.l.b16 %v305
    %v1118 = vunpack.c.h.b16 %v305
    %v1119 = vunpack.c.l.b16 %v306
    %v1120 = vunpack.c.h.b16 %v306
    %v1121 = vunpack.c.l.b16 %v307
    %v1122 = vunpack.c.h.b16 %v307
    %v1123 = vunpack.c.l.b16 %v308
    %v1124 = vunpack.c.h.b16 %v308
    %v1125 = vunpack.c.l.b16 %v309
    %v1126 = vunpack.c.h.b16 %v309
    %v1127 = vunpack.c.l.b16 %v310
    %v1128 = vunpack.c.h.b16 %v310
    %v1129 = vunpack.c.l.b16 %v311
    %v1130 = vunpack.c.h.b16 %v311
    %v1131 = vunpack.c.l.b16 %v312
    %v1132 = vunpack.c.h.b16 %v312
    %v1133 = vunpack.c.l.b16 %v313
    %v1134 = vunpack.c.h.b16 %v313
    %v1135 = vunpack.c.l.b16 %v314
    %v1136 = vunpack.c.h.b16 %v314
    %v1137 = vunpack.c.l.b16 %v315
    %v1138 = vunpack.c.h.b16 %v315
    %v1139 = vunpack.c.l.b16 %v316
    %v1140 = vunpack.c.h.b16 %v316
    %v1141 = vunpack.c.l.b16 %v317
    %v1142 = vunpack.c.h.b16 %v317
    %v1143 = vunpack.c.l.b16 %v318
    %v1144 = vunpack.c.h.b16 %v318
    %v1145 = vunpack.c.l.b16 %v319
    %v1146 = vunpack.c.h.b16 %v319
    %v1147 = vunpack.c.l.b16 %v320
    %v1148 = vunpack.c.h.b16 %v320
    %v1149 = vunpack.c.l.b16 %v321
    %v1150 = vunpack.c.h.b16 %v321
    %v1151 = vunpack.c.l.b16 %v322
    %v1152 = vunpack.c.h.b16 %v322
    %v1153 = vunpack.c.l.b16 %v323
    %v1154 = vunpack.c.h.b16 %v323
    %v1155 = vunpack.c.l.b16 %v324
    %v1156 = vunpack.c.h.b16 %v324
    %v1157 = vunpack.c.l.b16 %v325
    %v1158 = vunpack.c.h.b16 %v325
    %v1159 = vunpack.c.l.b16 %v326
    %v1160 = vunpack.c.h.b16 %v326
    %v1161 = vunpack.c.l.b16 %v327
    %v1162 = vunpack.c.h.b16 %v327
    %v1163 = vunpack.c.l.b16 %v328
    %v1164 = vunpack.c.h.b16 %v328
    %v1165 = vunpack.c.l.b16 %v329
    %v1166 = vunpack.c.h.b16 %v329
    %v1167 = vunpack.c.l.b16 %v330
    %v1168 = vunpack.c.h.b16 %v330
    %v1169 = vunpack.c.l.b16 %v331
    %v1170 = vunpack.c.h.b16 %v331
    %v1171 = vunpack.c.l.b16 %v332
    %v1172 = vunpack.c.h.b16 %v332
    %v1173 = vunpack.c.l.b16 %v333
    %v1174 = vunpack.c.h.b16 %v333
    %v1175 = vunpack.c.l.b16 %v334
    %v1176 = vunpack.c.h.b16 %v334
    %v1177 = vunpack.c.l.b16 %v335
    %v1178 = vunpack.c.h.b16 %v335
    %v1179 = vunpack.c.l.b16 %v336
    %v1180 = vunpack.c.h.b16 %v336
    %v1181 = vunpack.c.l.b16 %v337
    %v1182 = vunpack.c.h.b16 %v337
    %v1183 = vunpack.c.l.b16 %v338
    %v1184 = vunpack.c.h.b16 %v338
    %v1185 = vunpack.c.l.b16 %v339
    %v1186 = vunpack.c.h.b16 %v339
    %v1187 = vunpack.c.l.b16 %v340
    %v1188 = vunpack.c.h.b16 %v340
    %v1189 = vunpack.c.l.b16 %v341
    %v1190 = vunpack.c.h.b16 %v341
    %v1191 = vunpack.c.l.b16 %v342
    %v1192 = vunpack.c.h.b16 %v342
    %v1193 = vunpack.c.l.b16 %v343
    %v1194 = vunpack.c.h.b16 %v343
    %v1195 = vunpack.c.l.b16 %v344
    %v1196 = vunpack.c.h.b16 %v344
    %v1197 = vunpack.c.l.b16 %v345
    %v1198 = vunpack.c.h.b16 %v345
    %v1199 = vunpack.c.l.b16 %v346
    %v1200 = vunpack.c.h.b16 %v346
    %v1201 = vunpack.c.l.b16 %v347
    %v1202 = vunpack.c.h.b16 %v347
    %v1203 = vunpack.c.l.b16 %v348
    %v1204 = vunpack.c.h.b16 %v348
    %v1205 = vunpack.c.l.b16 %v349
    %v1206 = vunpack.c.h.b16 %v349
    %v1207 = vunpack.c.l.b16 %v350
    %v1208 = vunpack.c.h.b16 %v350
    %v1209 = vunpack.c.l.b16 %v351
    %v1210 = vunpack.c.h.b16 %v351
    %v1211 = vunpack.c.l.b16 %v352
    %v1212 = vunpack.c.h.b16 %v352
    %v1213 = vunpack.c.l.b16 %v353
    %v1214 = vunpack.c.h.b16 %v353
    %v1215 = vunpack.c.l.b16 %v354
    %v1216 = vunpack.c.h.b16 %v354
    %v1217 = vunpack.c.l.b16 %v355
    %v1218 = vunpack.c.h.b16 %v355
    %v1219 = vunpack.c.l.b16 %v356
    %v1220 = vunpack.c.h.b16 %v356
    %v1221 = vunpack.c.l.b16 %v357
    %v1222 = vunpack.c.h.b16 %v357
    %v1223 = vunpack.c.l.b16 %v358
    %v1224 = vunpack.c.h.b16 %v358
    %v1225 = vunpack.c.l.b16 %v359
    %v1226 = vunpack.c.h.b16 %v359
    %v1227 = vunpack.c.l.b16 %v360
    %v1228 = vunpack.c.h.b16 %v360
    %v1229 = vunpack.c.l.b16 %v361
    %v1230 = vunpack.c.h.b16 %v361
    %v1231 = vunpack.c.l.b16 %v362
    %v1232 = vunpack.c.h.b16 %v362
    %v1233 = vunpack.c.l.b16 %v363
    %v1234 = vunpack.c.h.b16 %v363
    %v1235 = vunpack.c.l.b16 %v364
    %v1236 = vunpack.c.h.b16 %v364
    %v1237 = vunpack.c.l.b16 %v365
    %v1238 = vunpack.c.h.b16 %v365
    %v1239 = vunpack.c.l.b16 %v366
    %v1240 = vunpack.c.h.b16 %v366
    %v1241 = vunpack.c.l.b16 %v367
    %v1242 = vunpack.c.h.b16 %v367
    %v1243 = vunpack.c.l.b16 %v368
    %v1244 = vunpack.c.h.b16 %v368
    %v1245 = vunpack.c.l.b16 %v369
    %v1246 = vunpack.c.h.b16 %v369
    %v1247 = vunpack.c.l.b16 %v370
    %v1248 = vunpack.c.h.b16 %v370
    %v1249 = vpack.c.b16 %v679, %v673
    %v1250 = vpack.c.b16 %v680, %v674
    %v1251 = vpack.c.b16 %v681, %v675
    %v1252 = vpack.c.b16 %v682, %v676
    %v1253 = vpack.c.b16 %v683, %v677
    %v1254 = vpack.c.b16 %v684, %v678
    %v1255 = vpack.c.b16 %v691, %v685
    %v1256 = vpack.c.b16 %v692, %v686
    %v1257 = vpack.c.b16 %v693, %v687
    %v1258 = vpack.c.b16 %v694, %v688
    %v1259 = vpack.c.b16 %v695, %v689
    %v1260 = vpack.c.b16 %v696, %v690
    %v1261 = vpack.c.b16 %v703, %v697
    %v1262 = vpack.c.b16 %v704, %v698
    %v1263 = vpack.c.b16 %v705, %v699
    %v1264 = vpack.c.b16 %v706, %v700
    %v1265 = vpack.c.b16 %v707, %v701
    %v1266 = vpack.c.b16 %v708, %v702
    %v1267 = vpack.c.b16 %v715, %v709
    %v1268 = vpack.c.b16 %v716, %v710
    %v1269 = vpack.c.b16 %v717, %v711
    %v1270 = vpack.c.b16 %v718, %v712
    %v1271 = vpack.c.b16 %v719, %v713
    %v1272 = vpack.c.b16 %v720, %v714
    %v1273 = vpack.c.b16 %v727, %v721
    %v1274 = vpack.c.b16 %v728, %v722
    %v1275 = vpack.c.b16 %v729, %v723
    %v1276 = vpack.c.b16 %v730, %v724
    %v1277 = vpack.c.b16 %v731, %v725
    %v1278 = vpack.c.b16 %v732, %v726
    %v1279 = vpack.c.b16 %v739, %v733
    %v1280 = vpack.c.b16 %v740, %v734
    %v1281 = vpack.c.b16 %v741, %v735
    %v1282 = vpack.c.b16 %v742, %v736
    %v1283 = vpack.c.b16 %v743, %v737
    %v1284 = vpack.c.b16 %v744, %v738
    %v1285 = vpack.c.b16 %v751, %v745
    %v1286 = vpack.c.b16 %v752, %v746
    %v1287 = vpack.c.b16 %v753, %v747
    %v1288 = vpack.c.b16 %v754, %v748
    %v1289 = vpack.c.b16 %v755, %v749
    %v1290 = vpack.c.b16 %v756, %v750
    %v1291 = vpack.c.b16 %v763, %v757
    %v1292 = vpack.c.b16 %v764, %v758
    %v1293 = vpack.c.b16 %v765, %v759
    %v1294 = vpack.c.b16 %v766, %v760
    %v1295 = vpack.c.b16 %v767, %v761
    %v1296 = vpack.c.b16 %v768, %v762
    %v1297 = vpack.c.b16 %v775, %v769
    %v1298 = vpack.c.b16 %v776, %v770
    %v1299 = vpack.c.b16 %v777, %v771
    %v1300 = vpack.c.b16 %v778, %v772
    %v1301 = vpack.c.b16 %v779, %v773
    %v1302 = vpack.c.b16 %v780, %v774
    %v1303 = vpack.c.b16 %v787, %v781
    %v1304 = vpack.c.b16 %v788, %v782
    %v1305 = vpack.c.b16 %v789, %v783
    %v1306 = vpack.c.b16 %v790, %v784
    %v1307 = vpack.c.b16 %v791, %v785
    %v1308 = vpack.c.b16 %v792, %v786
    %v1309 = vpack.c.b16 %v799, %v793
    %v1310 = vpack.c.b16 %v800, %v794
    %v1311 = vpack.c.b16 %v801, %v795
    %v1312 = vpack.c.b16 %v802, %v796
    %v1313 = vpack.c.b16 %v803, %v797
    %v1314 = vpack.c.b16 %v804, %v798
    %v1315 = vpack.c.b16 %v811, %v805
    %v1316 = vpack.c.b16 %v812, %v806
    %v1317 = vpack.c.b16 %v813, %v807
    %v1318 = vpack.c.b16 %v814, %v808
    %v1319 = vpack.c.b16 %v815, %v809
    %v1320 = vpack.c.b16 %v816, %v810
    %v1321 = vpack.c.b16 %v823, %v817
    %v1322 = vpack.c.b16 %v824, %v818
    %v1323 = vpack.c.b16 %v825, %v819
    %v1324 = vpack.c.b16 %v826, %v820
    %v1325 = vpack.c.b16 %v827, %v821
    %v1326 = vpack.c.b16 %v828, %v822
    %v1327 = vpack.c.b16 %v835, %v829
    %v1328 = vpack.c.b16 %v836, %v830
    %v1329 = vpack.c.b16 %v837, %v831
    %v1330 = vpack.c.b16 %v838, %v832
    %v1331 = vpack.c.b16 %v839, %v833
    %v1332 = vpack.c.b16 %v840, %v834
    %v1333 = vpack.c.b16 %v847, %v841
    %v1334 = vpack.c.b16 %v848, %v842
    %v1335 = vpack.c.b16 %v849, %v843
    %v1336 = vpack.c.b16 %v850, %v844
    %v1337 = vpack.c.b16 %v851, %v845
    %v1338 = vpack.c.b16 %v852, %v846
    %v1339 = vpack.c.b16 %v859, %v853
    %v1340 = vpack.c.b16 %v860, %v854
    %v1341 = vpack.c.b16 %v861, %v855
    %v1342 = vpack.c.b16 %v862, %v856
    %v1343 = vpack.c.b16 %v863, %v857
    %v1344 = vpack.c.b16 %v864, %v858
    %v1345 = vpack.c.b16 %v871, %v865
    %v1346 = vpack.c.b16 %v872, %v866
    %v1347 = vpack.c.b16 %v873, %v867
    %v1348 = vpack.c.b16 %v874, %v868
    %v1349 = vpack.c.b16 %v875, %v869
    %v1350 = vpack.c.b16 %v876, %v870
    %v1351 = vpack.c.b16 %v883, %v877
    %v1352 = vpack.c.b16 %v884, %v878
    %v1353 = vpack.c.b16 %v885, %v879
    %v1354 = vpack.c.b16 %v886, %v880
    %v1355 = vpack.c.b16 %v887, %v881
    %v1356 = vpack.c.b16 %v888, %v882
    %v1357 = vpack.c.b16 %v895, %v889
    %v1358 = vpack.c.b16 %v896, %v890
    %v1359 = vpack.c.b16 %v897, %v891
    %v1360 = vpack.c.b16 %v898, %v892
    %v1361 = vpack.c.b16 %v899, %v893
    %v1362 = vpack.c.b16 %v900, %v894
    %v1363 = vpack.c.b16 %v907, %v901
    %v1364 = vpack.c.b16 %v908, %v902
    %v1365 = vpack.c.b16 %v909, %v903
    %v1366 = vpack.c.b16 %v910, %v904
    %v1367 = vpack.c.b16 %v911, %v905
    %v1368 = vpack.c.b16 %v912, %v906
    %v1369 = vpack.c.b16 %v919, %v913
    %v1370 = vpack.c.b16 %v920, %v914
    %v1371 = vpack.c.b16 %v921, %v915
    %v1372 = vpack.c.b16 %v922, %v916
    %v1373 = vpack.c.b16 %v923, %v917
    %v1374 = vpack.c.b16 %v924, %v918
    %v1375 = vpack.c.b16 %v931, %v925
    %v1376 = vpack.c.b16 %v932, %v926
    %v1377 = vpack.c.b16 %v933, %v927
    %v1378 = vpack.c.b16 %v934, %v928
    %v1379 = vpack.c.b16 %v935, %v929
    %v1380 = vpack.c.b16 %v936, %v930
    %v1381 = vpack.c.b16 %v943, %v937
    %v1382 = vpack.c.b16 %v944, %v938
    %v1383 = vpack.c.b16 %v945, %v939
    %v1384 = vpack.c.b16 %v946, %v940
    %v1385 = vpack.c.b16 %v947, %v941
    %v1386 = vpack.c.b16 %v948, %v942
    %v1387 = vpack.c.b16 %v955, %v949
    %v1388 = vpack.c.b16 %v956, %v950
    %v1389 = vpack.c.b16 %v957, %v951
    %v1390 = vpack.c.b16 %v958, %v952
    %v1391 = vpack.c.b16 %v959, %v953
    %v1392 = vpack.c.b16 %v960, %v954
    %v1393 = vpack.c.b16 %v967, %v961
    %v1394 = vpack.c.b16 %v968, %v962
    %v1395 = vpack.c.b16 %v969, %v963
    %v1396 = vpack.c.b16 %v970, %v964
    %v1397 = vpack.c.b16 %v971, %v965
    %v1398 = vpack.c.b16 %v972, %v966
    %v1399 = vpack.c.b16 %v979, %v973
    %v1400 = vpack.c.b16 %v980, %v974
    %v1401 = vpack.c.b16 %v981, %v975
    %v1402 = vpack.c.b16 %v982, %v976
    %v1403 = vpack.c.b16 %v983, %v977
    %v1404 = vpack.c.b16 %v984, %v978
    %v1405 = vpack.c.b16 %v991, %v985
    %v1406 = vpack.c.b16 %v992, %v986
    %v1407 = vpack.c.b16 %v993, %v987
    %v1408 = vpack.c.b16 %v994, %v988
    %v1409 = vpack.c.b16 %v995, %v989
    %v1410 = vpack.c.b16 %v996, %v990
    %v1411 = vpack.c.b16 %v1003, %v997
    %v1412 = vpack.c.b16 %v1004, %v998
    %v1413 = vpack.c.b16 %v1005, %v999
    %v1414 = vpack.c.b16 %v1006, %v1000
    %v1415 = vpack.c.b16 %v1007, %v1001
    %v1416 = vpack.c.b16 %v1008, %v1002
    %v1417 = vpack.c.b16 %v1015, %v1009
    %v1418 = vpack.c.b16 %v1016, %v1010
    %v1419 = vpack.c.b16 %v1017, %v1011
    %v1420 = vpack.c.b16 %v1018, %v1012
    %v1421 = vpack.c.b16 %v1019, %v1013
    %v1422 = vpack.c.b16 %v1020, %v1014
    %v1423 = vpack.c.b16 %v1027, %v1021
    %v1424 = vpack.c.b16 %v1028, %v1022
    %v1425 = vpack.c.b16 %v1029, %v1023
    %v1426 = vpack.c.b16 %v1030, %v1024
    %v1427 = vpack.c.b16 %v1031, %v1025
    %v1428 = vpack.c.b16 %v1032, %v1026
    %v1429 = vpack.c.b16 %v1039, %v1033
    %v1430 = vpack.c.b16 %v1040, %v1034
    %v1431 = vpack.c.b16 %v1041, %v1035
    %v1432 = vpack.c.b16 %v1042, %v1036
    %v1433 = vpack.c.b16 %v1043, %v1037
    %v1434 = vpack.c.b16 %v1044, %v1038
    %v1435 = vpack.c.b16 %v1051, %v1045
    %v1436 = vpack.c.b16 %v1052, %v1046
    %v1437 = vpack.c.b16 %v1053, %v1047
    %v1438 = vpack.c.b16 %v1054, %v1048
    %v1439 = vpack.c.b16 %v1055, %v1049
    %v1440 = vpack.c.b16 %v1056, %v1050
    %v1441 = vpack.c.b16 %v1063, %v1057
    %v1442 = vpack.c.b16 %v1064, %v1058
    %v1443 = vpack.c.b16 %v1065, %v1059
    %v1444 = vpack.c.b16 %v1066, %v1060
    %v1445 = vpack.c.b16 %v1067, %v1061
    %v1446 = vpack.c.b16 %v1068, %v1062
    %v1447 = vpack.c.b16 %v1075, %v1069
    %v1448 = vpack.c.b16 %v1076, %v1070
    %v1449 = vpack.c.b16 %v1077, %v1071
    %v1450 = vpack.c.b16 %v1078, %v1072
    %v1451 = vpack.c.b16 %v1079, %v1073
    %v1452 = vpack.c.b16 %v1080, %v1074
    %v1453 = vpack.c.b16 %v1087, %v1081
    %v1454 = vpack.c.b16 %v1088, %v1082
    %v1455 = vpack.c.b16 %v1089, %v1083
    %v1456 = vpack.c.b16 %v1090, %v1084
    %v1457 = vpack.c.b16 %v1091, %v1085
    %v1458 = vpack.c.b16 %v1092, %v1086
    %v1459 = vpack.c.b16 %v1099, %v1093
    %v1460 = vpack.c.b16 %v1100, %v1094
    %v1461 = vpack.c.b16 %v1101, %v1095
    %v1462 = vpack.c.b16 %v1102, %v1096
    %v1463 = vpack.c.b16 %v1103, %v1097
    %v1464 = vpack.c.b16 %v1104, %v1098
    %v1465 = vpack.c.b16 %v1111, %v1105
    %v1466 = vpack.c.b16 %v1112, %v1106
    %v1467 = vpack.c.b16 %v1113, %v1107
    %v1468 = vpack.c.b16 %v1114, %v1108
    %v1469 = vpack.c.b16 %v1115, %v1109
    %v1470 = vpack.c.b16 %v1116, %v1110
    %v1471 = vpack.c.b16 %v1123, %v1117
    %v1472 = vpack.c.b16 %v1124, %v1118
    %v1473 = vpack.c.b16 %v1125, %v1119
    %v1474 = vpack.c.b16 %v1126, %v1120
    %v1475 = vpack.c.b16 %v1127, %v1121
    %v1476 = vpack.c.b16 %v1128, %v1122
    %v1477 = vpack.c.b16 %v1135, %v1129
    %v1478 = vpack.c.b16 %v1136, %v1130
    %v1479 = vpack.c.b16 %v1137, %v1131
    %v1480 = vpack.c.b16 %v1138, %v1132
    %v1481 = vpack.c.b16 %v1139, %v1133
    %v1482 = vpack.c.b16 %v1140, %v1134
    %v1483 = vpack.c.b16 %v1147, %v1141
    %v1484 = vpack.c.b16 %v1148, %v1142
    %v1485 = vpack.c.b16 %v1149, %v1143
    %v1486 = vpack.c.b16 %v1150, %v1144
    %v1487 = vpack.c.b16 %v1151, %v1145
    %v1488 = vpack.c.b16 %v1152, %v1146
    %v1489 = vpack.c.b16 %v1159, %v1153
    %v1490 = vpack.c.b16 %v1160, %v1154
    %v1491 = vpack.c.b16 %v1161, %v1155
    %v1492 = vpack.c.b16 %v1162, %v1156
    %v1493 = vpack.c.b16 %v1163, %v1157
    %v1494 = vpack.c.b16 %v1164, %v1158
    %v1495 = vpack.c.b16 %v1171, %v1165
    %v1496 = vpack.c.b16 %v1172, %v1166
    %v1497 = vpack.c.b16 %v1173, %v1167
    %v1498 = vpack.c.b16 %v1174, %v1168
    %v1499 = vpack.c.b16 %v1175, %v1169
    %v1500 = vpack.c.b16 %v1176, %v1170
    %v1501 = vpack.c.b16 %v1183, %v1177
    %v1502 = vpack.c.b16 %v1184, %v1178
    %v1503 = vpack.c.b16 %v1185, %v1179
    %v1504 = vpack.c.b16 %v1186, %v1180
    %v1505 = vpack.c.b16 %v1187, %v1181
    %v1506 = vpack.c.b16 %v1188, %v1182
    %v1507 = vpack.c.b16 %v1195, %v1189
    %v1508 = vpack.c.b16 %v1196, %v1190
    %v1509 = vpack.c.b16 %v1197, %v1191
    %v1510 = vpack.c.b16 %v1198, %v1192
    %v1511 = vpack.c.b16 %v1199, %v1193
    %v1512 = vpack.c.b16 %v1200, %v1194
    %v1513 = vpack.c.b16 %v1207, %v1201
    %v1514 = vpack.c.b16 %v1208, %v1202
    %v1515 = vpack.c.b16 %v1209, %v1203
    %v1516 = vpack.c.b16 %v1210, %v1204
    %v1517 = vpack.c.b16 %v1211, %v1205
    %v1518 = vpack.c.b16 %v1212, %v1206
    %v1519 = vpack.c.b16 %v1219, %v1213
    %v1520 = vpack.c.b16 %v1220, %v1214
    %v1521 = vpack.c.b16 %v1221, %v1215
    %v1522 = vpack.c.b16 %v1222, %v1216
    %v1523 = vpack.c.b16 %v1223, %v1217
    %v1524 = vpack.c.b16 %v1224, %v1218
    %v1525 = vpack.c.b16 %v1231, %v1225
    %v1526 = vpack.c.b16 %v1232, %v1226
    %v1527 = vpack.c.b16 %v1233, %v1227
    %v1528 = vpack.c.b16 %v1234, %v1228
    %v1529 = vpack.c.b16 %v1235, %v1229
    %v1530 = vpack.c.b16 %v1236, %v1230
    %v1531 = vpack.c.b16 %v1243, %v1237
    %v1532 = vpack.c.b16 %v1244, %v1238
    %v1533 = vpack.c.b16 %v1245, %v1239
    %v1534 = vpack.c.b16 %v1246, %v1240
    %v1535 = vpack.c.b16 %v1247, %v1241
    %v1536 = vpack.c.b16 %v1248, %v1242
    %1825 = vmatpush.bf16.xpose.msra.mxu0 %v1291
    %1826 = vmatpush.bf16.xpose.msra.mxu0 %v1285
    %1827 = vmatpush.bf16.xpose.msra.mxu0 %v1279
    %1828 = vmatpush.bf16.xpose.msra.mxu0 %v1273
    %1829 = vmatpush.bf16.xpose.msra.mxu0 %v1267
    %1830 = vmatpush.bf16.xpose.msra.mxu0 %v1261
    %1831 = vmatpush.bf16.xpose.msra.mxu0 %v1255
    %1832 = vmatpush.bf16.xpose.msra.mxu0 %v1249
    %1833 = vmatmul.bf16.gmra.mxu0 %v77
    %v1834 = vpop.f32.mrf.mxu0
    %v1835 = vadd.f32 %v373, %v1834
    %v1836 = vpop.f32.mrf.mxu0
    %1837 = vdwg.mxu0
    %1838 = vmatpush.bf16.xpose.msra.mxu0 %v1292
    %1839 = vmatpush.bf16.xpose.msra.mxu0 %v1286
    %1840 = vmatpush.bf16.xpose.msra.mxu0 %v1280
    %1841 = vmatpush.bf16.xpose.msra.mxu0 %v1274
    %1842 = vmatpush.bf16.xpose.msra.mxu0 %v1268
    %1843 = vmatpush.bf16.xpose.msra.mxu0 %v1262
    %1844 = vmatpush.bf16.xpose.msra.mxu0 %v1256
    %1845 = vmatpush.bf16.xpose.msra.mxu0 %v1250
    %1846 = vmatmul.bf16.gmra.mxu0 %v78
    %v1847 = vpop.f32.mrf.mxu0
    %v1848 = vadd.f32 %v1835, %v1847
    %v1849 = vpop.f32.mrf.mxu0
    %1850 = vdwg.mxu0
    %1851 = vmatpush.bf16.xpose.msra.mxu0 %v1293
    %1852 = vmatpush.bf16.xpose.msra.mxu0 %v1287
    %1853 = vmatpush.bf16.xpose.msra.mxu0 %v1281
    %1854 = vmatpush.bf16.xpose.msra.mxu0 %v1275
    %1855 = vmatpush.bf16.xpose.msra.mxu0 %v1269
    %1856 = vmatpush.bf16.xpose.msra.mxu0 %v1263
    %1857 = vmatpush.bf16.xpose.msra.mxu0 %v1257
    %1858 = vmatpush.bf16.xpose.msra.mxu0 %v1251
    %1859 = vmatmul.bf16.gmra.mxu0 %v79
    %v1860 = vpop.f32.mrf.mxu0
    %v1861 = vadd.f32 %v1848, %v1860
    %v1862 = vpop.f32.mrf.mxu0
    %1863 = vdwg.mxu0
    %1864 = vmatpush.bf16.xpose.msra.mxu0 %v1294
    %1865 = vmatpush.bf16.xpose.msra.mxu0 %v1288
    %1866 = vmatpush.bf16.xpose.msra.mxu0 %v1282
    %1867 = vmatpush.bf16.xpose.msra.mxu0 %v1276
    %1868 = vmatpush.bf16.xpose.msra.mxu0 %v1270
    %1869 = vmatpush.bf16.xpose.msra.mxu0 %v1264
    %1870 = vmatpush.bf16.xpose.msra.mxu0 %v1258
    %1871 = vmatpush.bf16.xpose.msra.mxu0 %v1252
    %1872 = vmatmul.bf16.gmra.mxu0 %v80
    %v1873 = vpop.f32.mrf.mxu0
    %v1874 = vadd.f32 %v1861, %v1873
    %v1875 = vpop.f32.mrf.mxu0
    %1876 = vdwg.mxu0
    %1877 = vmatpush.bf16.xpose.msra.mxu0 %v1295
    %1878 = vmatpush.bf16.xpose.msra.mxu0 %v1289
    %1879 = vmatpush.bf16.xpose.msra.mxu0 %v1283
    %1880 = vmatpush.bf16.xpose.msra.mxu0 %v1277
    %1881 = vmatpush.bf16.xpose.msra.mxu0 %v1271
    %1882 = vmatpush.bf16.xpose.msra.mxu0 %v1265
    %1883 = vmatpush.bf16.xpose.msra.mxu0 %v1259
    %1884 = vmatpush.bf16.xpose.msra.mxu0 %v1253
    %1885 = vmatmul.bf16.gmra.mxu0 %v81
    %v1886 = vpop.f32.mrf.mxu0
    %v1887 = vadd.f32 %v1874, %v1886
    %v1888 = vpop.f32.mrf.mxu0
    %1889 = vdwg.mxu0
    %1890 = vmatpush.bf16.xpose.msra.mxu0 %v1296
    %1891 = vmatpush.bf16.xpose.msra.mxu0 %v1290
    %1892 = vmatpush.bf16.xpose.msra.mxu0 %v1284
    %1893 = vmatpush.bf16.xpose.msra.mxu0 %v1278
    %1894 = vmatpush.bf16.xpose.msra.mxu0 %v1272
    %1895 = vmatpush.bf16.xpose.msra.mxu0 %v1266
    %1896 = vmatpush.bf16.xpose.msra.mxu0 %v1260
    %1897 = vmatpush.bf16.xpose.msra.mxu0 %v1254
    %1898 = vmatmul.bf16.gmra.mxu0 %v82
    %v1899 = vpop.f32.mrf.mxu0
    %v1900 = vadd.f32 %v1887, %v1899
    %v1901 = vpop.f32.mrf.mxu0
    %1902 = vdwg.mxu0
    %1903 = vmatpush.bf16.xpose.msra.mxu0 %v1339
    %1904 = vmatpush.bf16.xpose.msra.mxu0 %v1333
    %1905 = vmatpush.bf16.xpose.msra.mxu0 %v1327
    %1906 = vmatpush.bf16.xpose.msra.mxu0 %v1321
    %1907 = vmatpush.bf16.xpose.msra.mxu0 %v1315
    %1908 = vmatpush.bf16.xpose.msra.mxu0 %v1309
    %1909 = vmatpush.bf16.xpose.msra.mxu0 %v1303
    %1910 = vmatpush.bf16.xpose.msra.mxu0 %v1297
    %1911 = vmatmul.bf16.gmra.mxu0 %v77
    %v1912 = vpop.f32.mrf.mxu0
    %v1913 = vadd.f32 %v374, %v1912
    %v1914 = vpop.f32.mrf.mxu0
    %1915 = vdwg.mxu0
    %1916 = vmatpush.bf16.xpose.msra.mxu0 %v1340
    %1917 = vmatpush.bf16.xpose.msra.mxu0 %v1334
    %1918 = vmatpush.bf16.xpose.msra.mxu0 %v1328
    %1919 = vmatpush.bf16.xpose.msra.mxu0 %v1322
    %1920 = vmatpush.bf16.xpose.msra.mxu0 %v1316
    %1921 = vmatpush.bf16.xpose.msra.mxu0 %v1310
    %1922 = vmatpush.bf16.xpose.msra.mxu0 %v1304
    %1923 = vmatpush.bf16.xpose.msra.mxu0 %v1298
    %1924 = vmatmul.bf16.gmra.mxu0 %v78
    %v1925 = vpop.f32.mrf.mxu0
    %v1926 = vadd.f32 %v1913, %v1925
    %v1927 = vpop.f32.mrf.mxu0
    %1928 = vdwg.mxu0
    %1929 = vmatpush.bf16.xpose.msra.mxu0 %v1341
    %1930 = vmatpush.bf16.xpose.msra.mxu0 %v1335
    %1931 = vmatpush.bf16.xpose.msra.mxu0 %v1329
    %1932 = vmatpush.bf16.xpose.msra.mxu0 %v1323
    %1933 = vmatpush.bf16.xpose.msra.mxu0 %v1317
    %1934 = vmatpush.bf16.xpose.msra.mxu0 %v1311
    %1935 = vmatpush.bf16.xpose.msra.mxu0 %v1305
    %1936 = vmatpush.bf16.xpose.msra.mxu0 %v1299
    %1937 = vmatmul.bf16.gmra.mxu0 %v79
    %v1938 = vpop.f32.mrf.mxu0
    %v1939 = vadd.f32 %v1926, %v1938
    %v1940 = vpop.f32.mrf.mxu0
    %1941 = vdwg.mxu0
    %1942 = vmatpush.bf16.xpose.msra.mxu0 %v1342
    %1943 = vmatpush.bf16.xpose.msra.mxu0 %v1336
    %1944 = vmatpush.bf16.xpose.msra.mxu0 %v1330
    %1945 = vmatpush.bf16.xpose.msra.mxu0 %v1324
    %1946 = vmatpush.bf16.xpose.msra.mxu0 %v1318
    %1947 = vmatpush.bf16.xpose.msra.mxu0 %v1312
    %1948 = vmatpush.bf16.xpose.msra.mxu0 %v1306
    %1949 = vmatpush.bf16.xpose.msra.mxu0 %v1300
    %1950 = vmatmul.bf16.gmra.mxu0 %v80
    %v1951 = vpop.f32.mrf.mxu0
    %v1952 = vadd.f32 %v1939, %v1951
    %v1953 = vpop.f32.mrf.mxu0
    %1954 = vdwg.mxu0
    %1955 = vmatpush.bf16.xpose.msra.mxu0 %v1343
    %1956 = vmatpush.bf16.xpose.msra.mxu0 %v1337
    %1957 = vmatpush.bf16.xpose.msra.mxu0 %v1331
    %1958 = vmatpush.bf16.xpose.msra.mxu0 %v1325
    %1959 = vmatpush.bf16.xpose.msra.mxu0 %v1319
    %1960 = vmatpush.bf16.xpose.msra.mxu0 %v1313
    %1961 = vmatpush.bf16.xpose.msra.mxu0 %v1307
    %1962 = vmatpush.bf16.xpose.msra.mxu0 %v1301
    %1963 = vmatmul.bf16.gmra.mxu0 %v81
    %v1964 = vpop.f32.mrf.mxu0
    %v1965 = vadd.f32 %v1952, %v1964
    %v1966 = vpop.f32.mrf.mxu0
    %1967 = vdwg.mxu0
    %1968 = vmatpush.bf16.xpose.msra.mxu0 %v1344
    %1969 = vmatpush.bf16.xpose.msra.mxu0 %v1338
    %1970 = vmatpush.bf16.xpose.msra.mxu0 %v1332
    %1971 = vmatpush.bf16.xpose.msra.mxu0 %v1326
    %1972 = vmatpush.bf16.xpose.msra.mxu0 %v1320
    %1973 = vmatpush.bf16.xpose.msra.mxu0 %v1314
    %1974 = vmatpush.bf16.xpose.msra.mxu0 %v1308
    %1975 = vmatpush.bf16.xpose.msra.mxu0 %v1302
    %1976 = vmatmul.bf16.gmra.mxu0 %v82
    %v1977 = vpop.f32.mrf.mxu0
    %v1978 = vadd.f32 %v1965, %v1977
    %v1979 = vpop.f32.mrf.mxu0
    %1980 = vdwg.mxu0
    %1981 = vmatpush.bf16.xpose.msra.mxu0 %v1387
    %1982 = vmatpush.bf16.xpose.msra.mxu0 %v1381
    %1983 = vmatpush.bf16.xpose.msra.mxu0 %v1375
    %1984 = vmatpush.bf16.xpose.msra.mxu0 %v1369
    %1985 = vmatpush.bf16.xpose.msra.mxu0 %v1363
    %1986 = vmatpush.bf16.xpose.msra.mxu0 %v1357
    %1987 = vmatpush.bf16.xpose.msra.mxu0 %v1351
    %1988 = vmatpush.bf16.xpose.msra.mxu0 %v1345
    %1989 = vmatmul.bf16.gmra.mxu0 %v77
    %v1990 = vpop.f32.mrf.mxu0
    %v1991 = vadd.f32 %v375, %v1990
    %v1992 = vpop.f32.mrf.mxu0
    %1993 = vdwg.mxu0
    %1994 = vmatpush.bf16.xpose.msra.mxu0 %v1388
    %1995 = vmatpush.bf16.xpose.msra.mxu0 %v1382
    %1996 = vmatpush.bf16.xpose.msra.mxu0 %v1376
    %1997 = vmatpush.bf16.xpose.msra.mxu0 %v1370
    %1998 = vmatpush.bf16.xpose.msra.mxu0 %v1364
    %1999 = vmatpush.bf16.xpose.msra.mxu0 %v1358
    %2000 = vmatpush.bf16.xpose.msra.mxu0 %v1352
    %2001 = vmatpush.bf16.xpose.msra.mxu0 %v1346
    %2002 = vmatmul.bf16.gmra.mxu0 %v78
    %v2003 = vpop.f32.mrf.mxu0
    %v2004 = vadd.f32 %v1991, %v2003
    %v2005 = vpop.f32.mrf.mxu0
    %2006 = vdwg.mxu0
    %2007 = vmatpush.bf16.xpose.msra.mxu0 %v1389
    %2008 = vmatpush.bf16.xpose.msra.mxu0 %v1383
    %2009 = vmatpush.bf16.xpose.msra.mxu0 %v1377
    %2010 = vmatpush.bf16.xpose.msra.mxu0 %v1371
    %2011 = vmatpush.bf16.xpose.msra.mxu0 %v1365
    %2012 = vmatpush.bf16.xpose.msra.mxu0 %v1359
    %2013 = vmatpush.bf16.xpose.msra.mxu0 %v1353
    %2014 = vmatpush.bf16.xpose.msra.mxu0 %v1347
    %2015 = vmatmul.bf16.gmra.mxu0 %v79
    %v2016 = vpop.f32.mrf.mxu0
    %v2017 = vadd.f32 %v2004, %v2016
    %v2018 = vpop.f32.mrf.mxu0
    %2019 = vdwg.mxu0
    %2020 = vmatpush.bf16.xpose.msra.mxu0 %v1390
    %2021 = vmatpush.bf16.xpose.msra.mxu0 %v1384
    %2022 = vmatpush.bf16.xpose.msra.mxu0 %v1378
    %2023 = vmatpush.bf16.xpose.msra.mxu0 %v1372
    %2024 = vmatpush.bf16.xpose.msra.mxu0 %v1366
    %2025 = vmatpush.bf16.xpose.msra.mxu0 %v1360
    %2026 = vmatpush.bf16.xpose.msra.mxu0 %v1354
    %2027 = vmatpush.bf16.xpose.msra.mxu0 %v1348
    %2028 = vmatmul.bf16.gmra.mxu0 %v80
    %v2029 = vpop.f32.mrf.mxu0
    %v2030 = vadd.f32 %v2017, %v2029
    %v2031 = vpop.f32.mrf.mxu0
    %2032 = vdwg.mxu0
    %2033 = vmatpush.bf16.xpose.msra.mxu0 %v1391
    %2034 = vmatpush.bf16.xpose.msra.mxu0 %v1385
    %2035 = vmatpush.bf16.xpose.msra.mxu0 %v1379
    %2036 = vmatpush.bf16.xpose.msra.mxu0 %v1373
    %2037 = vmatpush.bf16.xpose.msra.mxu0 %v1367
    %2038 = vmatpush.bf16.xpose.msra.mxu0 %v1361
    %2039 = vmatpush.bf16.xpose.msra.mxu0 %v1355
    %2040 = vmatpush.bf16.xpose.msra.mxu0 %v1349
    %2041 = vmatmul.bf16.gmra.mxu0 %v81
    %v2042 = vpop.f32.mrf.mxu0
    %v2043 = vadd.f32 %v2030, %v2042
    %v2044 = vpop.f32.mrf.mxu0
    %2045 = vdwg.mxu0
    %2046 = vmatpush.bf16.xpose.msra.mxu0 %v1392
    %2047 = vmatpush.bf16.xpose.msra.mxu0 %v1386
    %2048 = vmatpush.bf16.xpose.msra.mxu0 %v1380
    %2049 = vmatpush.bf16.xpose.msra.mxu0 %v1374
    %2050 = vmatpush.bf16.xpose.msra.mxu0 %v1368
    %2051 = vmatpush.bf16.xpose.msra.mxu0 %v1362
    %2052 = vmatpush.bf16.xpose.msra.mxu0 %v1356
    %2053 = vmatpush.bf16.xpose.msra.mxu0 %v1350
    %2054 = vmatmul.bf16.gmra.mxu0 %v82
    %v2055 = vpop.f32.mrf.mxu0
    %v2056 = vadd.f32 %v2043, %v2055
    %v2057 = vpop.f32.mrf.mxu0
    %2058 = vdwg.mxu0
    %2059 = vmatpush.bf16.xpose.msra.mxu0 %v1435
    %2060 = vmatpush.bf16.xpose.msra.mxu0 %v1429
    %2061 = vmatpush.bf16.xpose.msra.mxu0 %v1423
    %2062 = vmatpush.bf16.xpose.msra.mxu0 %v1417
    %2063 = vmatpush.bf16.xpose.msra.mxu0 %v1411
    %2064 = vmatpush.bf16.xpose.msra.mxu0 %v1405
    %2065 = vmatpush.bf16.xpose.msra.mxu0 %v1399
    %2066 = vmatpush.bf16.xpose.msra.mxu0 %v1393
    %2067 = vmatmul.bf16.gmra.mxu0 %v77
    %v2068 = vpop.f32.mrf.mxu0
    %v2069 = vadd.f32 %v376, %v2068
    %v2070 = vpop.f32.mrf.mxu0
    %2071 = vdwg.mxu0
    %2072 = vmatpush.bf16.xpose.msra.mxu0 %v1436
    %2073 = vmatpush.bf16.xpose.msra.mxu0 %v1430
    %2074 = vmatpush.bf16.xpose.msra.mxu0 %v1424
    %2075 = vmatpush.bf16.xpose.msra.mxu0 %v1418
    %2076 = vmatpush.bf16.xpose.msra.mxu0 %v1412
    %2077 = vmatpush.bf16.xpose.msra.mxu0 %v1406
    %2078 = vmatpush.bf16.xpose.msra.mxu0 %v1400
    %2079 = vmatpush.bf16.xpose.msra.mxu0 %v1394
    %2080 = vmatmul.bf16.gmra.mxu0 %v78
    %v2081 = vpop.f32.mrf.mxu0
    %v2082 = vadd.f32 %v2069, %v2081
    %v2083 = vpop.f32.mrf.mxu0
    %2084 = vdwg.mxu0
    %2085 = vmatpush.bf16.xpose.msra.mxu0 %v1437
    %2086 = vmatpush.bf16.xpose.msra.mxu0 %v1431
    %2087 = vmatpush.bf16.xpose.msra.mxu0 %v1425
    %2088 = vmatpush.bf16.xpose.msra.mxu0 %v1419
    %2089 = vmatpush.bf16.xpose.msra.mxu0 %v1413
    %2090 = vmatpush.bf16.xpose.msra.mxu0 %v1407
    %2091 = vmatpush.bf16.xpose.msra.mxu0 %v1401
    %2092 = vmatpush.bf16.xpose.msra.mxu0 %v1395
    %2093 = vmatmul.bf16.gmra.mxu0 %v79
    %v2094 = vpop.f32.mrf.mxu0
    %v2095 = vadd.f32 %v2082, %v2094
    %v2096 = vpop.f32.mrf.mxu0
    %2097 = vdwg.mxu0
    %2098 = vmatpush.bf16.xpose.msra.mxu0 %v1438
    %2099 = vmatpush.bf16.xpose.msra.mxu0 %v1432
    %2100 = vmatpush.bf16.xpose.msra.mxu0 %v1426
    %2101 = vmatpush.bf16.xpose.msra.mxu0 %v1420
    %2102 = vmatpush.bf16.xpose.msra.mxu0 %v1414
    %2103 = vmatpush.bf16.xpose.msra.mxu0 %v1408
    %2104 = vmatpush.bf16.xpose.msra.mxu0 %v1402
    %2105 = vmatpush.bf16.xpose.msra.mxu0 %v1396
    %2106 = vmatmul.bf16.gmra.mxu0 %v80
    %v2107 = vpop.f32.mrf.mxu0
    %v2108 = vadd.f32 %v2095, %v2107
    %v2109 = vpop.f32.mrf.mxu0
    %2110 = vdwg.mxu0
    %2111 = vmatpush.bf16.xpose.msra.mxu0 %v1439
    %2112 = vmatpush.bf16.xpose.msra.mxu0 %v1433
    %2113 = vmatpush.bf16.xpose.msra.mxu0 %v1427
    %2114 = vmatpush.bf16.xpose.msra.mxu0 %v1421
    %2115 = vmatpush.bf16.xpose.msra.mxu0 %v1415
    %2116 = vmatpush.bf16.xpose.msra.mxu0 %v1409
    %2117 = vmatpush.bf16.xpose.msra.mxu0 %v1403
    %2118 = vmatpush.bf16.xpose.msra.mxu0 %v1397
    %2119 = vmatmul.bf16.gmra.mxu0 %v81
    %v2120 = vpop.f32.mrf.mxu0
    %v2121 = vadd.f32 %v2108, %v2120
    %v2122 = vpop.f32.mrf.mxu0
    %2123 = vdwg.mxu0
    %2124 = vmatpush.bf16.xpose.msra.mxu0 %v1440
    %2125 = vmatpush.bf16.xpose.msra.mxu0 %v1434
    %2126 = vmatpush.bf16.xpose.msra.mxu0 %v1428
    %2127 = vmatpush.bf16.xpose.msra.mxu0 %v1422
    %2128 = vmatpush.bf16.xpose.msra.mxu0 %v1416
    %2129 = vmatpush.bf16.xpose.msra.mxu0 %v1410
    %2130 = vmatpush.bf16.xpose.msra.mxu0 %v1404
    %2131 = vmatpush.bf16.xpose.msra.mxu0 %v1398
    %2132 = vmatmul.bf16.gmra.mxu0 %v82
    %v2133 = vpop.f32.mrf.mxu0
    %v2134 = vadd.f32 %v2121, %v2133
    %v2135 = vpop.f32.mrf.mxu0
    %2136 = vdwg.mxu0
    %2137 = vmatpush.bf16.xpose.msra.mxu0 %v1483
    %2138 = vmatpush.bf16.xpose.msra.mxu0 %v1477
    %2139 = vmatpush.bf16.xpose.msra.mxu0 %v1471
    %2140 = vmatpush.bf16.xpose.msra.mxu0 %v1465
    %2141 = vmatpush.bf16.xpose.msra.mxu0 %v1459
    %2142 = vmatpush.bf16.xpose.msra.mxu0 %v1453
    %2143 = vmatpush.bf16.xpose.msra.mxu0 %v1447
    %2144 = vmatpush.bf16.xpose.msra.mxu0 %v1441
    %2145 = vmatmul.bf16.gmra.mxu0 %v77
    %v2146 = vpop.f32.mrf.mxu0
    %v2147 = vadd.f32 %v377, %v2146
    %v2148 = vpop.f32.mrf.mxu0
    %2149 = vdwg.mxu0
    %2150 = vmatpush.bf16.xpose.msra.mxu0 %v1484
    %2151 = vmatpush.bf16.xpose.msra.mxu0 %v1478
    %2152 = vmatpush.bf16.xpose.msra.mxu0 %v1472
    %2153 = vmatpush.bf16.xpose.msra.mxu0 %v1466
    %2154 = vmatpush.bf16.xpose.msra.mxu0 %v1460
    %2155 = vmatpush.bf16.xpose.msra.mxu0 %v1454
    %2156 = vmatpush.bf16.xpose.msra.mxu0 %v1448
    %2157 = vmatpush.bf16.xpose.msra.mxu0 %v1442
    %2158 = vmatmul.bf16.gmra.mxu0 %v78
    %v2159 = vpop.f32.mrf.mxu0
    %v2160 = vadd.f32 %v2147, %v2159
    %v2161 = vpop.f32.mrf.mxu0
    %2162 = vdwg.mxu0
    %2163 = vmatpush.bf16.xpose.msra.mxu0 %v1485
    %2164 = vmatpush.bf16.xpose.msra.mxu0 %v1479
    %2165 = vmatpush.bf16.xpose.msra.mxu0 %v1473
    %2166 = vmatpush.bf16.xpose.msra.mxu0 %v1467
    %2167 = vmatpush.bf16.xpose.msra.mxu0 %v1461
    %2168 = vmatpush.bf16.xpose.msra.mxu0 %v1455
    %2169 = vmatpush.bf16.xpose.msra.mxu0 %v1449
    %2170 = vmatpush.bf16.xpose.msra.mxu0 %v1443
    %2171 = vmatmul.bf16.gmra.mxu0 %v79
    %v2172 = vpop.f32.mrf.mxu0
    %v2173 = vadd.f32 %v2160, %v2172
    %v2174 = vpop.f32.mrf.mxu0
    %2175 = vdwg.mxu0
    %2176 = vmatpush.bf16.xpose.msra.mxu0 %v1486
    %2177 = vmatpush.bf16.xpose.msra.mxu0 %v1480
    %2178 = vmatpush.bf16.xpose.msra.mxu0 %v1474
    %2179 = vmatpush.bf16.xpose.msra.mxu0 %v1468
    %2180 = vmatpush.bf16.xpose.msra.mxu0 %v1462
    %2181 = vmatpush.bf16.xpose.msra.mxu0 %v1456
    %2182 = vmatpush.bf16.xpose.msra.mxu0 %v1450
    %2183 = vmatpush.bf16.xpose.msra.mxu0 %v1444
    %2184 = vmatmul.bf16.gmra.mxu0 %v80
    %v2185 = vpop.f32.mrf.mxu0
    %v2186 = vadd.f32 %v2173, %v2185
    %v2187 = vpop.f32.mrf.mxu0
    %2188 = vdwg.mxu0
    %2189 = vmatpush.bf16.xpose.msra.mxu0 %v1487
    %2190 = vmatpush.bf16.xpose.msra.mxu0 %v1481
    %2191 = vmatpush.bf16.xpose.msra.mxu0 %v1475
    %2192 = vmatpush.bf16.xpose.msra.mxu0 %v1469
    %2193 = vmatpush.bf16.xpose.msra.mxu0 %v1463
    %2194 = vmatpush.bf16.xpose.msra.mxu0 %v1457
    %2195 = vmatpush.bf16.xpose.msra.mxu0 %v1451
    %2196 = vmatpush.bf16.xpose.msra.mxu0 %v1445
    %2197 = vmatmul.bf16.gmra.mxu0 %v81
    %v2198 = vpop.f32.mrf.mxu0
    %v2199 = vadd.f32 %v2186, %v2198
    %v2200 = vpop.f32.mrf.mxu0
    %2201 = vdwg.mxu0
    %2202 = vmatpush.bf16.xpose.msra.mxu0 %v1488
    %2203 = vmatpush.bf16.xpose.msra.mxu0 %v1482
    %2204 = vmatpush.bf16.xpose.msra.mxu0 %v1476
    %2205 = vmatpush.bf16.xpose.msra.mxu0 %v1470
    %2206 = vmatpush.bf16.xpose.msra.mxu0 %v1464
    %2207 = vmatpush.bf16.xpose.msra.mxu0 %v1458
    %2208 = vmatpush.bf16.xpose.msra.mxu0 %v1452
    %2209 = vmatpush.bf16.xpose.msra.mxu0 %v1446
    %2210 = vmatmul.bf16.gmra.mxu0 %v82
    %v2211 = vpop.f32.mrf.mxu0
    %v2212 = vadd.f32 %v2199, %v2211
    %v2213 = vpop.f32.mrf.mxu0
    %2214 = vdwg.mxu0
    %2215 = vmatpush.bf16.xpose.msra.mxu0 %v1531
    %2216 = vmatpush.bf16.xpose.msra.mxu0 %v1525
    %2217 = vmatpush.bf16.xpose.msra.mxu0 %v1519
    %2218 = vmatpush.bf16.xpose.msra.mxu0 %v1513
    %2219 = vmatpush.bf16.xpose.msra.mxu0 %v1507
    %2220 = vmatpush.bf16.xpose.msra.mxu0 %v1501
    %2221 = vmatpush.bf16.xpose.msra.mxu0 %v1495
    %2222 = vmatpush.bf16.xpose.msra.mxu0 %v1489
    %2223 = vmatmul.bf16.gmra.mxu0 %v77
    %v2224 = vpop.f32.mrf.mxu0
    %v2225 = vadd.f32 %v378, %v2224
    %v2226 = vpop.f32.mrf.mxu0
    %2227 = vdwg.mxu0
    %2228 = vmatpush.bf16.xpose.msra.mxu0 %v1532
    %2229 = vmatpush.bf16.xpose.msra.mxu0 %v1526
    %2230 = vmatpush.bf16.xpose.msra.mxu0 %v1520
    %2231 = vmatpush.bf16.xpose.msra.mxu0 %v1514
    %2232 = vmatpush.bf16.xpose.msra.mxu0 %v1508
    %2233 = vmatpush.bf16.xpose.msra.mxu0 %v1502
    %2234 = vmatpush.bf16.xpose.msra.mxu0 %v1496
    %2235 = vmatpush.bf16.xpose.msra.mxu0 %v1490
    %2236 = vmatmul.bf16.gmra.mxu0 %v78
    %v2237 = vpop.f32.mrf.mxu0
    %v2238 = vadd.f32 %v2225, %v2237
    %v2239 = vpop.f32.mrf.mxu0
    %2240 = vdwg.mxu0
    %2241 = vmatpush.bf16.xpose.msra.mxu0 %v1533
    %2242 = vmatpush.bf16.xpose.msra.mxu0 %v1527
    %2243 = vmatpush.bf16.xpose.msra.mxu0 %v1521
    %2244 = vmatpush.bf16.xpose.msra.mxu0 %v1515
    %2245 = vmatpush.bf16.xpose.msra.mxu0 %v1509
    %2246 = vmatpush.bf16.xpose.msra.mxu0 %v1503
    %2247 = vmatpush.bf16.xpose.msra.mxu0 %v1497
    %2248 = vmatpush.bf16.xpose.msra.mxu0 %v1491
    %2249 = vmatmul.bf16.gmra.mxu0 %v79
    %v2250 = vpop.f32.mrf.mxu0
    %v2251 = vadd.f32 %v2238, %v2250
    %v2252 = vpop.f32.mrf.mxu0
    %2253 = vdwg.mxu0
    %2254 = vmatpush.bf16.xpose.msra.mxu0 %v1534
    %2255 = vmatpush.bf16.xpose.msra.mxu0 %v1528
    %2256 = vmatpush.bf16.xpose.msra.mxu0 %v1522
    %2257 = vmatpush.bf16.xpose.msra.mxu0 %v1516
    %2258 = vmatpush.bf16.xpose.msra.mxu0 %v1510
    %2259 = vmatpush.bf16.xpose.msra.mxu0 %v1504
    %2260 = vmatpush.bf16.xpose.msra.mxu0 %v1498
    %2261 = vmatpush.bf16.xpose.msra.mxu0 %v1492
    %2262 = vmatmul.bf16.gmra.mxu0 %v80
    %v2263 = vpop.f32.mrf.mxu0
    %v2264 = vadd.f32 %v2251, %v2263
    %v2265 = vpop.f32.mrf.mxu0
    %2266 = vdwg.mxu0
    %2267 = vmatpush.bf16.xpose.msra.mxu0 %v1535
    %2268 = vmatpush.bf16.xpose.msra.mxu0 %v1529
    %2269 = vmatpush.bf16.xpose.msra.mxu0 %v1523
    %2270 = vmatpush.bf16.xpose.msra.mxu0 %v1517
    %2271 = vmatpush.bf16.xpose.msra.mxu0 %v1511
    %2272 = vmatpush.bf16.xpose.msra.mxu0 %v1505
    %2273 = vmatpush.bf16.xpose.msra.mxu0 %v1499
    %2274 = vmatpush.bf16.xpose.msra.mxu0 %v1493
    %2275 = vmatmul.bf16.gmra.mxu0 %v81
    %v2276 = vpop.f32.mrf.mxu0
    %v2277 = vadd.f32 %v2264, %v2276
    %v2278 = vpop.f32.mrf.mxu0
    %2279 = vdwg.mxu0
    %2280 = vmatpush.bf16.xpose.msra.mxu0 %v1536
    %2281 = vmatpush.bf16.xpose.msra.mxu0 %v1530
    %2282 = vmatpush.bf16.xpose.msra.mxu0 %v1524
    %2283 = vmatpush.bf16.xpose.msra.mxu0 %v1518
    %2284 = vmatpush.bf16.xpose.msra.mxu0 %v1512
    %2285 = vmatpush.bf16.xpose.msra.mxu0 %v1506
    %2286 = vmatpush.bf16.xpose.msra.mxu0 %v1500
    %2287 = vmatpush.bf16.xpose.msra.mxu0 %v1494
    %2288 = vmatmul.bf16.gmra.mxu0 %v82
    %v2289 = vpop.f32.mrf.mxu0
    %v2290 = vadd.f32 %v2277, %v2289
    %v2291 = vpop.f32.mrf.mxu0
    %2292 = vdwg.mxu0
    %v2293 = vtanh.pop %v1900
    %v2294 = vtanh.pop %v1978
    %v2295 = vtanh.pop %v2056
    %v2296 = vtanh.pop %v2134
    %v2297 = vtanh.pop %v2212
    %v2298 = vtanh.pop %v2290
    %v2305 = vrot.slane %v2294, 6
    %v2306 = vrot.slane %v2295, 4
    %v2307 = vrot.slane %v2296, 2
    %v2308 = vrot.slane %v2298, 6
    %vm2309 = vcmask 1041408
    %v2310 = vsel %vm2309, %v2293, %v2305
    %vm2311 = vcmask 1045508
    %v2312 = vsel %vm2311, %v2306, %v2307
    %vm2313 = vcmask 1043456
    %v2314 = vsel %vm2313, %v2310, %v2312
    %v2315 = vsel %vm2309, %v2297, %v2308
    %2318 = vst [vmem:[#allocation8] sm:$0xff] %v2314
    %2319 = vst [vmem:[#allocation8 + $0x8] sm:$0xf] %v2315
    // Predicated region
    $region26: #{tpu_custom_call.1} parent=1 // pred_check
      _
    $region27: #{tpu_custom_call.1} parent=1 // pred_check_branch
      %2321 = sbr.rel (0) target = $region29
    $region28: #{tpu_custom_call.1} parent=1 // pred_region
      %2323 = vsyncadd [#allocation4], 0
      %s2325 = sshll.u32 [#allocation8], 4
      %s2326 = int_to_ptr.vmem [resolvable:$true] %s2325
      %s2327 = sshll.u32 %s3, 4
      %s2328 = int_to_ptr.hbm [resolvable:$true] %s2327
      %2330 = dma.vmem_to_hbm [thread:$0]  %s2326, 192, %s2328, [#allocation4]
    $region29: #{tpu_custom_call.1} parent=1 // pred_fallthru
      _
    // Predicated region
    $region30: #{tpu_custom_call.1} parent=1 // pred_check
      _
    $region31: #{tpu_custom_call.1} parent=1 // pred_check_branch
      %2332 = sbr.rel (0) target = $region33
    $region32: #{tpu_custom_call.1} parent=1 // pred_region
      %2334 = dma.done [#allocation4], 192
    $region33: #{tpu_custom_call.1} parent=1 // pred_fallthru
      _
    %2335 = vsyncpa [#allocation3], 1
    %2336 = vsyncpa [#allocation6], 1
    %2337 = vsyncpa [#allocation4], 1

</llo_original>
